<compile_context>
chip_gen: v7x
topology: tpu7x:2x2x1
jax: 0.10.0
libtpu: 0.0.40
codegen_flags: <defaults>
</compile_context>

<pallas_src>
import math
from functools import partial

import jax
import jax.numpy as jnp
import numpy as np
from jax import lax
from jax.experimental import pallas as pl
from jax.experimental.pallas import tpu as pltpu


# --------------------------------------------------------------------------- #
# Pallas kernel: one batch tile of the 3-layer MLP.
#   s_ref : (TILE_B, S)   a_ref : (TILE_B, A)      streamed per grid step
#   w1s/w1a/b1/w2/b2/w3/b3 : (out, in)/(out, 1)    grid-invariant, VMEM resident
#   out_ref : (state_size, TILE_B)                 feature-major, lane-dense
# --------------------------------------------------------------------------- #
def _state_predictor_kernel(
    s_ref, a_ref, w1s_ref, w1a_ref, b1_ref, w2_ref, b2_ref, w3_ref, b3_ref, out_ref
):
    # Cast at load; all VPU work (bias add, ReLU) stays in f32 (v5e-safe).
    s = s_ref[...].astype(jnp.float32)                       # (TILE_B, S)
    a = a_ref[...].astype(jnp.float32)                       # (TILE_B, A)

    # Layer 1: contract the lane (feature) axes of both operands -> (32, TILE_B).
    # Equivalent to w1 @ [state|action].T without any concat or host transpose.
    dn = (((1,), (1,)), ((), ()))
    h = lax.dot_general(w1s_ref[...], s, dn, preferred_element_type=jnp.float32)
    h = h + lax.dot_general(w1a_ref[...], a, dn, preferred_element_type=jnp.float32)
    h = jnp.maximum(h + b1_ref[...], 0.0)                    # (32, TILE_B)

    # Layer 2 / head: plain feature-major matmuls, lane axis = batch tile.
    h = jnp.maximum(
        jnp.dot(w2_ref[...], h, preferred_element_type=jnp.float32) + b2_ref[...],
        0.0,
    )                                                         # (16, TILE_B)
    out = jnp.dot(w3_ref[...], h, preferred_element_type=jnp.float32) + b3_ref[...]
    out_ref[...] = out.astype(out_ref.dtype)                  # (state, TILE_B)


# --------------------------------------------------------------------------- #
# Parameter construction (mirrors the torch __init__ shapes & init scheme).
# --------------------------------------------------------------------------- #
def init_params(state_size, action_size, key):
    sm = state_size + action_size
    layer_sizes = [sm, 32, 16, state_size]
    ks = jax.random.split(key, 6)

    def fanin_uniform(k, shape, fan_in):
        bound = 1.0 / math.sqrt(fan_in)
        return jax.random.uniform(k, shape, jnp.float32, -bound, bound)

    # nn.Linear weight shape is (out, in); biases (out,)
    w1 = fanin_uniform(ks[0], (layer_sizes[1], layer_sizes[0]), layer_sizes[0])
    b1 = fanin_uniform(ks[1], (layer_sizes[1],), layer_sizes[0])
    w2 = fanin_uniform(ks[2], (layer_sizes[2], layer_sizes[1]), layer_sizes[1])
    b2 = fanin_uniform(ks[3], (layer_sizes[2],), layer_sizes[1])
    # head.weight: nn.init.uniform_(-3e-3, 3e-3); head.bias keeps the default
    # nn.Linear init (uniform +-1/sqrt(fan_in=16)), matching the source module.
    w3 = jax.random.uniform(ks[4], (layer_sizes[3], layer_sizes[2]), jnp.float32,
                            -3e-3, 3e-3)
    b3 = fanin_uniform(ks[5], (layer_sizes[3],), layer_sizes[2])
    return dict(w1=w1, b1=b1, w2=w2, b2=b2, w3=w3, b3=b3)


# --------------------------------------------------------------------------- #
# One-time parameter preparation (hoisted out of the hot forward path):
#   * split w1 into its state / action columns (kills the per-call concat),
#   * reshape biases to (out, 1) column vectors for lane broadcast.
# Weights stay f32 — they are tiny, DMA'd once and VMEM-resident, so streaming
# them bf16 saves nothing.
# --------------------------------------------------------------------------- #
def prepare_params(params, state_size):
    w1 = params["w1"].astype(jnp.float32)
    return dict(
        w1s=w1[:, :state_size],
        w1a=w1[:, state_size:],
        b1=params["b1"].reshape(-1, 1).astype(jnp.float32),
        w2=params["w2"].astype(jnp.float32),
        b2=params["b2"].reshape(-1, 1).astype(jnp.float32),
        w3=params["w3"].astype(jnp.float32),
        b3=params["b3"].reshape(-1, 1).astype(jnp.float32),
    )


def _round_up(x, m):
    return ((x + m - 1) // m) * m


# --------------------------------------------------------------------------- #
# Batched forward wrapper.
#   state : (B, state_size)   action : (B, action_size)   ->   (B, state_size)
# Per-row semantics are identical to the torch module's forward.
#   stream_dtype=jnp.bfloat16 halves streamed HBM bytes (accumulation stays f32).
# --------------------------------------------------------------------------- #
@partial(jax.jit, static_argnames=("tile_b", "stream_dtype"))
def state_predictor_forward(state, action, prepared, *, tile_b=1024,
                            stream_dtype=jnp.float32):
    assert tile_b % 128 == 0, "tile_b must be a multiple of 128 (lane width)"
    B, state_size = state.shape
    action_size = action.shape[1]
    h1 = prepared["w2"].shape[1]
    h2 = prepared["w2"].shape[0]
    out_size = prepared["w3"].shape[0]

    # Small batches collapse to a single grid step (perf-review item);
    # tile stays a multiple of 128 so output stores stay lane-dense.
    tile = min(tile_b, _round_up(B, 128))
    grid_b = pl.cdiv(B, tile)
    padded_b = grid_b * tile   # output sized to whole tiles -> never ragged

    state = state.astype(stream_dtype)
    action = action.astype(stream_dtype)

    const = lambda i: (0, 0)
    out_t = pl.pallas_call(
        _state_predictor_kernel,
        out_shape=jax.ShapeDtypeStruct((out_size, padded_b), stream_dtype),
        grid=(grid_b,),
        in_specs=[
            pl.BlockSpec((tile, state_size), lambda i: (i, 0)),    # streamed
            pl.BlockSpec((tile, action_size), lambda i: (i, 0)),   # streamed
            pl.BlockSpec((h1, state_size), const),                 # resident
            pl.BlockSpec((h1, action_size), const),
            pl.BlockSpec((h1, 1), const),
            pl.BlockSpec((h2, h1), const),
            pl.BlockSpec((h2, 1), const),
            pl.BlockSpec((out_size, h2), const),
            pl.BlockSpec((out_size, 1), const),
        ],
        out_specs=pl.BlockSpec((out_size, tile), lambda i: (0, i)),
        compiler_params=pltpu.CompilerParams(
            dimension_semantics=("parallel",)                      # 2 TCs on v7x
        ),
    )(
        state, action,
        prepared["w1s"], prepared["w1a"], prepared["b1"],
        prepared["w2"], prepared["b2"],
        prepared["w3"], prepared["b3"],
    )

    # Batch-major view for callers; padding columns from ragged last input
    # blocks are dropped here. Downstream code that can consume feature-major
    # (out_size, B) should use out_t[:, :B] directly and skip this transpose.
    return out_t[:, :B].T


# --------------------------------------------------------------------------- #
# Pure-JAX reference (exact torch semantics, batched over rows).
# --------------------------------------------------------------------------- #
def state_predictor_ref(state, action, params):
    x = jnp.concatenate((state, action), axis=-1)
    x = jnp.maximum(x @ params["w1"].T + params["b1"], 0.0)
    x = jnp.maximum(x @ params["w2"].T + params["b2"], 0.0)
    return x @ params["w3"].T + params["b3"]


if __name__ == "__main__":
    state_size, action_size = 8, 4

    key = jax.random.PRNGKey(0)
    k_params, k_state, k_action = jax.random.split(key, 3)

    params = init_params(state_size, action_size, k_params)
    prepared = prepare_params(params, state_size)

    # 8 grid steps at tile_b=1024 -> 4 pipelined tiles per TensorCore on v7x.
    batch = 8192
    state = jax.random.normal(k_state, (batch, state_size), jnp.float32)
    action = jax.random.normal(k_action, (batch, action_size), jnp.float32)
    ref = state_predictor_ref(state, action, params)

    # 1) f32 streaming (exact path).
    out = jax.block_until_ready(state_predictor_forward(state, action, prepared))
    np.testing.assert_allclose(np.asarray(out), np.asarray(ref), rtol=1e-5, atol=1e-5)

    # 2) bf16 streaming (halved HBM bytes on streamed tiles; f32 accumulation).
    out_bf16 = jax.block_until_ready(
        state_predictor_forward(state, action, prepared, stream_dtype=jnp.bfloat16))
    np.testing.assert_allclose(np.asarray(out_bf16.astype(jnp.float32)),
                               np.asarray(ref), rtol=2e-2, atol=2e-2)

    # 3) Ragged batch: no explicit pad, Pallas edge-block handling on inputs.
    b2 = 2000
    out_ragged = jax.block_until_ready(
        state_predictor_forward(state[:b2], action[:b2], prepared))
    np.testing.assert_allclose(np.asarray(out_ragged), np.asarray(ref[:b2]),
                               rtol=1e-5, atol=1e-5)

    print("KERNEL_OK")
</pallas_src>

<mosaic_0001>
module attributes {stable_mosaic.version = 11 : i64} {
  func.func @_state_predictor_kernel(%arg0: i32, %arg1: memref<1024x8xf32, #tpu.memory_space<vmem>>, %arg2: memref<1024x4xf32, #tpu.memory_space<vmem>>, %arg3: memref<32x8xf32, #tpu.memory_space<vmem>>, %arg4: memref<32x4xf32, #tpu.memory_space<vmem>>, %arg5: memref<32x1xf32, #tpu.memory_space<vmem>>, %arg6: memref<16x32xf32, #tpu.memory_space<vmem>>, %arg7: memref<16x1xf32, #tpu.memory_space<vmem>>, %arg8: memref<8x16xf32, #tpu.memory_space<vmem>>, %arg9: memref<8x1xf32, #tpu.memory_space<vmem>>, %arg10: memref<8x1024xf32, #tpu.memory_space<vmem>>) attributes {dimension_semantics = [#tpu.dimension_semantics<parallel>], iteration_bounds = array<i64: 8>, scalar_prefetch = 0 : i64, scratch_operands = 0 : i64, tpu.core_type = #tpu.core_type<tc>, window_params = [{transform_indices = @transform_0, window_bounds = array<i64: 1024, 8>}, {transform_indices = @transform_1, window_bounds = array<i64: 1024, 4>}, {pipeline_mode = #tpu.pipeline_mode<synchronous>, transform_indices = @transform_2, window_bounds = array<i64: 32, 8>}, {pipeline_mode = #tpu.pipeline_mode<synchronous>, transform_indices = @transform_3, window_bounds = array<i64: 32, 4>}, {pipeline_mode = #tpu.pipeline_mode<synchronous>, transform_indices = @transform_4, window_bounds = array<i64: 32, 1>}, {pipeline_mode = #tpu.pipeline_mode<synchronous>, transform_indices = @transform_5, window_bounds = array<i64: 16, 32>}, {pipeline_mode = #tpu.pipeline_mode<synchronous>, transform_indices = @transform_6, window_bounds = array<i64: 16, 1>}, {pipeline_mode = #tpu.pipeline_mode<synchronous>, transform_indices = @transform_7, window_bounds = array<i64: 8, 16>}, {pipeline_mode = #tpu.pipeline_mode<synchronous>, transform_indices = @transform_8, window_bounds = array<i64: 8, 1>}, {transform_indices = @transform_9, window_bounds = array<i64: 8, 1024>}]} {
    %c0 = arith.constant 0 : index
    %c0_0 = arith.constant 0 : index
    %0 = vector.load %arg1[%c0, %c0_0] : memref<1024x8xf32, #tpu.memory_space<vmem>>, vector<1024x8xf32>
    %c0_1 = arith.constant 0 : index
    %c0_2 = arith.constant 0 : index
    %1 = vector.load %arg2[%c0_1, %c0_2] : memref<1024x4xf32, #tpu.memory_space<vmem>>, vector<1024x4xf32>
    %c0_3 = arith.constant 0 : index
    %c0_4 = arith.constant 0 : index
    %2 = vector.load %arg3[%c0_3, %c0_4] : memref<32x8xf32, #tpu.memory_space<vmem>>, vector<32x8xf32>
    %cst = arith.constant dense<0.000000e+00> : vector<32x1024xf32>
    %3 = tpu.matmul %2, %0, %cst {dimension_numbers = #tpu.dot_dimension_numbers<[1], [1], [0], [0], [0, 0, 1, 0], [], []>} : vector<32x8xf32>, vector<1024x8xf32>, vector<32x1024xf32> -> vector<32x1024xf32>
    %c0_5 = arith.constant 0 : index
    %c0_6 = arith.constant 0 : index
    %4 = vector.load %arg4[%c0_5, %c0_6] : memref<32x4xf32, #tpu.memory_space<vmem>>, vector<32x4xf32>
    %cst_7 = arith.constant dense<0.000000e+00> : vector<32x1024xf32>
    %5 = tpu.matmul %4, %1, %cst_7 {dimension_numbers = #tpu.dot_dimension_numbers<[1], [1], [0], [0], [0, 0, 1, 0], [], []>} : vector<32x4xf32>, vector<1024x4xf32>, vector<32x1024xf32> -> vector<32x1024xf32>
    %6 = arith.addf %3, %5 : vector<32x1024xf32>
    %c0_8 = arith.constant 0 : index
    %c0_9 = arith.constant 0 : index
    %7 = vector.load %arg5[%c0_8, %c0_9] : memref<32x1xf32, #tpu.memory_space<vmem>>, vector<32x1xf32>
    %8 = vector.broadcast %7 : vector<32x1xf32> to vector<32x1024xf32>
    %9 = arith.addf %6, %8 : vector<32x1024xf32>
    %cst_10 = arith.constant 0.000000e+00 : f32
    %10 = vector.broadcast %cst_10 : f32 to vector<32x1024xf32>
    %11 = arith.maximumf %9, %10 : vector<32x1024xf32>
    %c0_11 = arith.constant 0 : index
    %c0_12 = arith.constant 0 : index
    %12 = vector.load %arg6[%c0_11, %c0_12] : memref<16x32xf32, #tpu.memory_space<vmem>>, vector<16x32xf32>
    %cst_13 = arith.constant dense<0.000000e+00> : vector<16x1024xf32>
    %13 = tpu.matmul %12, %11, %cst_13 {dimension_numbers = #tpu.dot_dimension_numbers<[1], [0], [0], [1], [0, 0, 1, 1], [], []>} : vector<16x32xf32>, vector<32x1024xf32>, vector<16x1024xf32> -> vector<16x1024xf32>
    %c0_14 = arith.constant 0 : index
    %c0_15 = arith.constant 0 : index
    %14 = vector.load %arg7[%c0_14, %c0_15] : memref<16x1xf32, #tpu.memory_space<vmem>>, vector<16x1xf32>
    %15 = vector.broadcast %14 : vector<16x1xf32> to vector<16x1024xf32>
    %16 = arith.addf %13, %15 : vector<16x1024xf32>
    %cst_16 = arith.constant 0.000000e+00 : f32
    %17 = vector.broadcast %cst_16 : f32 to vector<16x1024xf32>
    %18 = arith.maximumf %16, %17 : vector<16x1024xf32>
    %c0_17 = arith.constant 0 : index
    %c0_18 = arith.constant 0 : index
    %19 = vector.load %arg8[%c0_17, %c0_18] : memref<8x16xf32, #tpu.memory_space<vmem>>, vector<8x16xf32>
    %cst_19 = arith.constant dense<0.000000e+00> : vector<8x1024xf32>
    %20 = tpu.matmul %19, %18, %cst_19 {dimension_numbers = #tpu.dot_dimension_numbers<[1], [0], [0], [1], [0, 0, 1, 1], [], []>} : vector<8x16xf32>, vector<16x1024xf32>, vector<8x1024xf32> -> vector<8x1024xf32>
    %c0_20 = arith.constant 0 : index
    %c0_21 = arith.constant 0 : index
    %21 = vector.load %arg9[%c0_20, %c0_21] : memref<8x1xf32, #tpu.memory_space<vmem>>, vector<8x1xf32>
    %22 = vector.broadcast %21 : vector<8x1xf32> to vector<8x1024xf32>
    %23 = arith.addf %20, %22 : vector<8x1024xf32>
    %c0_22 = arith.constant 0 : index
    %c0_23 = arith.constant 0 : index
    %24 = vector.load %arg10[%c0_22, %c0_23] : memref<8x1024xf32, #tpu.memory_space<vmem>>, vector<8x1024xf32>
    tpu.vector_store %arg10[%c0_22, %c0_23], %23 {strides = array<i32>} : memref<8x1024xf32, #tpu.memory_space<vmem>>, vector<8x1024xf32>,
    return
  }
  func.func @transform_0(%arg0: i32) -> (i32, i32) {
    %c0_i32 = arith.constant 0 : i32
    %c0_i32_0 = arith.constant 0 : i32
    return %arg0, %c0_i32 : i32, i32
  }
  func.func @transform_1(%arg0: i32) -> (i32, i32) {
    %c0_i32 = arith.constant 0 : i32
    %c0_i32_0 = arith.constant 0 : i32
    return %arg0, %c0_i32 : i32, i32
  }
  func.func @transform_2(%arg0: i32) -> (i32, i32) {
    %c0_i32 = arith.constant 0 : i32
    %c0_i32_0 = arith.constant 0 : i32
    %c0_i32_1 = arith.constant 0 : i32
    return %c0_i32, %c0_i32_0 : i32, i32
  }
  func.func @transform_3(%arg0: i32) -> (i32, i32) {
    %c0_i32 = arith.constant 0 : i32
    %c0_i32_0 = arith.constant 0 : i32
    %c0_i32_1 = arith.constant 0 : i32
    return %c0_i32, %c0_i32_0 : i32, i32
  }
  func.func @transform_4(%arg0: i32) -> (i32, i32) {
    %c0_i32 = arith.constant 0 : i32
    %c0_i32_0 = arith.constant 0 : i32
    %c0_i32_1 = arith.constant 0 : i32
    return %c0_i32, %c0_i32_0 : i32, i32
  }
  func.func @transform_5(%arg0: i32) -> (i32, i32) {
    %c0_i32 = arith.constant 0 : i32
    %c0_i32_0 = arith.constant 0 : i32
    %c0_i32_1 = arith.constant 0 : i32
    return %c0_i32, %c0_i32_0 : i32, i32
  }
  func.func @transform_6(%arg0: i32) -> (i32, i32) {
    %c0_i32 = arith.constant 0 : i32
    %c0_i32_0 = arith.constant 0 : i32
    %c0_i32_1 = arith.constant 0 : i32
    return %c0_i32, %c0_i32_0 : i32, i32
  }
  func.func @transform_7(%arg0: i32) -> (i32, i32) {
    %c0_i32 = arith.constant 0 : i32
    %c0_i32_0 = arith.constant 0 : i32
    %c0_i32_1 = arith.constant 0 : i32
    return %c0_i32, %c0_i32_0 : i32, i32
  }
  func.func @transform_8(%arg0: i32) -> (i32, i32) {
    %c0_i32 = arith.constant 0 : i32
    %c0_i32_0 = arith.constant 0 : i32
    %c0_i32_1 = arith.constant 0 : i32
    return %c0_i32, %c0_i32_0 : i32, i32
  }
  func.func @transform_9(%arg0: i32) -> (i32, i32) {
    %c0_i32 = arith.constant 0 : i32
    %c0_i32_0 = arith.constant 0 : i32
    return %c0_i32, %arg0 : i32, i32
  }
}

</mosaic_0001>

<llo_original>
// kernel: state_predictor_forward.1
$region0: #{state_predictor_forward.1}
  #allocation0 [shape = 'u32[]', space=smem, size = 0x4, offset = 0x4, fixed_abs, tag = 'smem constant byte address 0x4 - core index']
  #allocation1 [shape = 'u32[144,128]{1,0:T(1,128)}', space=vmem, size = 0x12000, scoped, tag = 'internal scratch']
  %s0 = inlined_call_operand.vmem [shape: f32[8192,8], index: 0, kind: input, shape index: {}]
  %s1 = inlined_call_operand.vmem [shape: f32[8192,4], index: 1, kind: input, shape index: {}]
  %s2 = inlined_call_operand.vmem [shape: f32[32,8], index: 2, kind: input, shape index: {}]
  %s3 = inlined_call_operand.vmem [shape: f32[32,4], index: 3, kind: input, shape index: {}]
  %s4 = inlined_call_operand.vmem [shape: f32[32,1], index: 4, kind: input, shape index: {}]
  %s5 = inlined_call_operand.vmem [shape: f32[16,32], index: 5, kind: input, shape index: {}]
  %s6 = inlined_call_operand.vmem [shape: f32[16,1], index: 6, kind: input, shape index: {}]
  %s7 = inlined_call_operand.vmem [shape: f32[8,16], index: 7, kind: input, shape index: {}]
  %s8 = inlined_call_operand.vmem [shape: f32[8,1], index: 8, kind: input, shape index: {}]
  %s9 = inlined_call_operand.hbm [shape: f32[8,8192], index: 9, kind: output, shape index: {}]
  %s10 = sld [smem:[#allocation0]]
  $region69: #{state_predictor_forward.1} parent=0
    _
  %s12 = ssub.s32 1, %s10
  %s13 = scalar_select 0, %s12, %s10
  $region1: #{state_predictor_forward.1} parent=0
    #allocation2 [shape = 'u8[65536]{0}', space=vmem, size = 0x10000, scoped, tag = 'output window, operand 0']
    #allocation3 [shape = 's32[2]{0}', space=sflag, size = 0x8, scoped, tag = 'scoped memory for state_predictor_forward.1']
    %14 = vsyncpa [#allocation3], 0
    %s15 = scalar_lea.sflag [#allocation3], 1
    %16 = vsyncpa %s15, 0
    loop: start=0, step=1, limit=10
    $region2: #{state_predictor_forward.1} parent=1 // loop_pre_header
      _
    $region3: #{state_predictor_forward.1} parent=1 // loop_header
      %s18 = sphi 0, %s22
      %p19 = scmp.ge.s32.totalorder %s18, 10
      %s28 = sphi 0, %s30
      %s31 = sphi 0, %s28
      %s32 = sphi 0, %s31
      %s48 = sphi 0, %s32
      %s54 = sphi 0, %s56
      %s57 = sphi 0, %s54
      %s58 = sphi 0, %s57
      %s74 = sphi 0, %s58
      %s78 = sphi 0, %s78
      %s80 = sphi 0, %s78
      %s81 = sphi 0, %s80
      %s95 = sphi 0, %s81
      %s99 = sphi 0, %s99
      %s101 = sphi 0, %s99
      %s102 = sphi 0, %s101
      %s116 = sphi 0, %s102
      %s120 = sphi 0, %s120
      %s122 = sphi 0, %s120
      %s123 = sphi 0, %s122
      %s137 = sphi 0, %s123
      %s141 = sphi 0, %s141
      %s143 = sphi 0, %s141
      %s144 = sphi 0, %s143
      %s158 = sphi 0, %s144
      %s162 = sphi 0, %s162
      %s164 = sphi 0, %s162
      %s165 = sphi 0, %s164
      %s179 = sphi 0, %s165
      %s183 = sphi 0, %s183
      %s185 = sphi 0, %s183
      %s186 = sphi 0, %s185
      %s200 = sphi 0, %s186
      %s204 = sphi 0, %s204
      %s206 = sphi 0, %s204
      %s207 = sphi 0, %s206
      %s221 = sphi 0, %s207
      %s227 = sphi 0, %s229
      %s230 = sphi 0, %s227
      %s231 = sphi 0, %s230
      %s247 = sphi 0, %s231
    $region4: #{state_predictor_forward.1} parent=1 // loop_header_branch
      %21 = sbr.rel (%p19) target = $region8
    $region5: #{state_predictor_forward.1} parent=1 // loop_body
      %s23 = ssub.s32 %s18, 1
      %s24 = ssub.s32 %s18, 2
      %s25 = sadd.s32 %s18, 1
      %s26 = ssub.s32 %s18, %s25
      %p27 = scmp.eq.s32.totalorder %s26, 0
      %s29 = sadd.s32 %s28, 1
      %s30 = scalar_select %p27, %s28, %s29
      %p33 = pneg %p27
      %p34 = scmp.eq.s32.totalorder %s18, 7
      %p35 = por %p33, %p34
      %p36 = scmp.ne.s32.totalorder %s28, %s31
      %p37 = scmp.eq.s32.totalorder %s18, 0
      %p38 = por %p36, %p37
      %p39 = scmp.ne.s32.totalorder %s28, %s31
      %p40 = scmp.eq.s32.totalorder %s23, 7
      %p41 = por %p39, %p40
      %p42 = scmp.ne.s32.totalorder %s31, %s32
      %p43 = scmp.eq.s32.totalorder %s23, 0
      %p44 = por %p42, %p43
      %p45 = scmp.ne.s32.totalorder %s31, %s32
      %p46 = scmp.eq.s32.totalorder %s24, 7
      %p47 = por %p45, %p46
      %p49 = scmp.ne.s32.totalorder %s32, %s48
      %p50 = scmp.eq.s32.totalorder %s24, 0
      %p51 = por %p49, %p50
      %s52 = ssub.s32 %s18, %s25
      %p53 = scmp.eq.s32.totalorder %s52, 0
      %s55 = sadd.s32 %s54, 1
      %s56 = scalar_select %p53, %s54, %s55
      %p59 = pneg %p53
      %p60 = scmp.eq.s32.totalorder %s18, 7
      %p61 = por %p59, %p60
      %p62 = scmp.ne.s32.totalorder %s54, %s57
      %p63 = scmp.eq.s32.totalorder %s18, 0
      %p64 = por %p62, %p63
      %p65 = scmp.ne.s32.totalorder %s54, %s57
      %p66 = scmp.eq.s32.totalorder %s23, 7
      %p67 = por %p65, %p66
      %p68 = scmp.ne.s32.totalorder %s57, %s58
      %p69 = scmp.eq.s32.totalorder %s23, 0
      %p70 = por %p68, %p69
      %p71 = scmp.ne.s32.totalorder %s57, %s58
      %p72 = scmp.eq.s32.totalorder %s24, 7
      %p73 = por %p71, %p72
      %p75 = scmp.ne.s32.totalorder %s58, %s74
      %p76 = scmp.eq.s32.totalorder %s24, 0
      %p77 = por %p75, %p76
      %s79 = sadd.s32 %s78, 1
      %p82 = scmp.eq.s32.totalorder %s18, 7
      %p83 = scmp.ne.s32.totalorder %s78, %s80
      %p84 = scmp.eq.s32.totalorder %s18, 0
      %p85 = por %p83, %p84
      %p86 = scmp.ne.s32.totalorder %s78, %s80
      %p87 = scmp.eq.s32.totalorder %s23, 7
      %p88 = por %p86, %p87
      %p89 = scmp.ne.s32.totalorder %s80, %s81
      %p90 = scmp.eq.s32.totalorder %s23, 0
      %p91 = por %p89, %p90
      %p92 = scmp.ne.s32.totalorder %s80, %s81
      %p93 = scmp.eq.s32.totalorder %s24, 7
      %p94 = por %p92, %p93
      %p96 = scmp.ne.s32.totalorder %s81, %s95
      %p97 = scmp.eq.s32.totalorder %s24, 0
      %p98 = por %p96, %p97
      %s100 = sadd.s32 %s99, 1
      %p103 = scmp.eq.s32.totalorder %s18, 7
      %p104 = scmp.ne.s32.totalorder %s99, %s101
      %p105 = scmp.eq.s32.totalorder %s18, 0
      %p106 = por %p104, %p105
      %p107 = scmp.ne.s32.totalorder %s99, %s101
      %p108 = scmp.eq.s32.totalorder %s23, 7
      %p109 = por %p107, %p108
      %p110 = scmp.ne.s32.totalorder %s101, %s102
      %p111 = scmp.eq.s32.totalorder %s23, 0
      %p112 = por %p110, %p111
      %p113 = scmp.ne.s32.totalorder %s101, %s102
      %p114 = scmp.eq.s32.totalorder %s24, 7
      %p115 = por %p113, %p114
      %p117 = scmp.ne.s32.totalorder %s102, %s116
      %p118 = scmp.eq.s32.totalorder %s24, 0
      %p119 = por %p117, %p118
      %s121 = sadd.s32 %s120, 1
      %p124 = scmp.eq.s32.totalorder %s18, 7
      %p125 = scmp.ne.s32.totalorder %s120, %s122
      %p126 = scmp.eq.s32.totalorder %s18, 0
      %p127 = por %p125, %p126
      %p128 = scmp.ne.s32.totalorder %s120, %s122
      %p129 = scmp.eq.s32.totalorder %s23, 7
      %p130 = por %p128, %p129
      %p131 = scmp.ne.s32.totalorder %s122, %s123
      %p132 = scmp.eq.s32.totalorder %s23, 0
      %p133 = por %p131, %p132
      %p134 = scmp.ne.s32.totalorder %s122, %s123
      %p135 = scmp.eq.s32.totalorder %s24, 7
      %p136 = por %p134, %p135
      %p138 = scmp.ne.s32.totalorder %s123, %s137
      %p139 = scmp.eq.s32.totalorder %s24, 0
      %p140 = por %p138, %p139
      %s142 = sadd.s32 %s141, 1
      %p145 = scmp.eq.s32.totalorder %s18, 7
      %p146 = scmp.ne.s32.totalorder %s141, %s143
      %p147 = scmp.eq.s32.totalorder %s18, 0
      %p148 = por %p146, %p147
      %p149 = scmp.ne.s32.totalorder %s141, %s143
      %p150 = scmp.eq.s32.totalorder %s23, 7
      %p151 = por %p149, %p150
      %p152 = scmp.ne.s32.totalorder %s143, %s144
      %p153 = scmp.eq.s32.totalorder %s23, 0
      %p154 = por %p152, %p153
      %p155 = scmp.ne.s32.totalorder %s143, %s144
      %p156 = scmp.eq.s32.totalorder %s24, 7
      %p157 = por %p155, %p156
      %p159 = scmp.ne.s32.totalorder %s144, %s158
      %p160 = scmp.eq.s32.totalorder %s24, 0
      %p161 = por %p159, %p160
      %s163 = sadd.s32 %s162, 1
      %p166 = scmp.eq.s32.totalorder %s18, 7
      %p167 = scmp.ne.s32.totalorder %s162, %s164
      %p168 = scmp.eq.s32.totalorder %s18, 0
      %p169 = por %p167, %p168
      %p170 = scmp.ne.s32.totalorder %s162, %s164
      %p171 = scmp.eq.s32.totalorder %s23, 7
      %p172 = por %p170, %p171
      %p173 = scmp.ne.s32.totalorder %s164, %s165
      %p174 = scmp.eq.s32.totalorder %s23, 0
      %p175 = por %p173, %p174
      %p176 = scmp.ne.s32.totalorder %s164, %s165
      %p177 = scmp.eq.s32.totalorder %s24, 7
      %p178 = por %p176, %p177
      %p180 = scmp.ne.s32.totalorder %s165, %s179
      %p181 = scmp.eq.s32.totalorder %s24, 0
      %p182 = por %p180, %p181
      %s184 = sadd.s32 %s183, 1
      %p187 = scmp.eq.s32.totalorder %s18, 7
      %p188 = scmp.ne.s32.totalorder %s183, %s185
      %p189 = scmp.eq.s32.totalorder %s18, 0
      %p190 = por %p188, %p189
      %p191 = scmp.ne.s32.totalorder %s183, %s185
      %p192 = scmp.eq.s32.totalorder %s23, 7
      %p193 = por %p191, %p192
      %p194 = scmp.ne.s32.totalorder %s185, %s186
      %p195 = scmp.eq.s32.totalorder %s23, 0
      %p196 = por %p194, %p195
      %p197 = scmp.ne.s32.totalorder %s185, %s186
      %p198 = scmp.eq.s32.totalorder %s24, 7
      %p199 = por %p197, %p198
      %p201 = scmp.ne.s32.totalorder %s186, %s200
      %p202 = scmp.eq.s32.totalorder %s24, 0
      %p203 = por %p201, %p202
      %s205 = sadd.s32 %s204, 1
      %p208 = scmp.eq.s32.totalorder %s18, 7
      %p209 = scmp.ne.s32.totalorder %s204, %s206
      %p210 = scmp.eq.s32.totalorder %s18, 0
      %p211 = por %p209, %p210
      %p212 = scmp.ne.s32.totalorder %s204, %s206
      %p213 = scmp.eq.s32.totalorder %s23, 7
      %p214 = por %p212, %p213
      %p215 = scmp.ne.s32.totalorder %s206, %s207
      %p216 = scmp.eq.s32.totalorder %s23, 0
      %p217 = por %p215, %p216
      %p218 = scmp.ne.s32.totalorder %s206, %s207
      %p219 = scmp.eq.s32.totalorder %s24, 7
      %p220 = por %p218, %p219
      %p222 = scmp.ne.s32.totalorder %s207, %s221
      %p223 = scmp.eq.s32.totalorder %s24, 0
      %p224 = por %p222, %p223
      %s225 = ssub.s32 %s18, %s25
      %p226 = scmp.eq.s32.totalorder %s225, 0
      %s228 = sadd.s32 %s227, 1
      %s229 = scalar_select %p226, %s227, %s228
      %p232 = pneg %p226
      %p233 = scmp.eq.s32.totalorder %s18, 7
      %p234 = por %p232, %p233
      %p235 = scmp.ne.s32.totalorder %s227, %s230
      %p236 = scmp.eq.s32.totalorder %s18, 0
      %p237 = por %p235, %p236
      %p238 = scmp.ne.s32.totalorder %s227, %s230
      %p239 = scmp.eq.s32.totalorder %s23, 7
      %p240 = por %p238, %p239
      %p241 = scmp.ne.s32.totalorder %s230, %s231
      %p242 = scmp.eq.s32.totalorder %s23, 0
      %p243 = por %p241, %p242
      %p244 = scmp.ne.s32.totalorder %s230, %s231
      %p245 = scmp.eq.s32.totalorder %s24, 7
      %p246 = por %p244, %p245
      %p248 = scmp.ne.s32.totalorder %s231, %s247
      %p249 = scmp.eq.s32.totalorder %s24, 0
      %p250 = por %p248, %p249
      %p251 = scmp.le.s32.totalorder 1, %s18
      %p252 = scmp.lt.s32.totalorder %s18, 9
      %p253 = pnand %p251, %p252
      %p254 = pneg %p253
      // Predicated region
      $region9: #{state_predictor_forward.1} parent=5 // pred_check
        _
      $region10: #{state_predictor_forward.1} parent=5 // pred_check_branch
        %256 = sbr.rel (%p253) target = $region12
      $region11: #{state_predictor_forward.1} parent=5 // pred_region
        %s257 = ssub.s32 %s18, 1
        // Predicated region
        $region13: #{state_predictor_forward.1} parent=11 // pred_check
          %p258 = pneg %p91
        $region14: #{state_predictor_forward.1} parent=11 // pred_check_branch
          %260 = sbr.rel (%p258) target = $region16
        $region15: #{state_predictor_forward.1} parent=11 // pred_region
          _
        $region16: #{state_predictor_forward.1} parent=11 // pred_fallthru
          _
        // Predicated region
        $region17: #{state_predictor_forward.1} parent=11 // pred_check
          %p261 = pneg %p112
        $region18: #{state_predictor_forward.1} parent=11 // pred_check_branch
          %263 = sbr.rel (%p261) target = $region20
        $region19: #{state_predictor_forward.1} parent=11 // pred_region
          _
        $region20: #{state_predictor_forward.1} parent=11 // pred_fallthru
          _
        // Predicated region
        $region21: #{state_predictor_forward.1} parent=11 // pred_check
          %p264 = pneg %p133
        $region22: #{state_predictor_forward.1} parent=11 // pred_check_branch
          %266 = sbr.rel (%p264) target = $region24
        $region23: #{state_predictor_forward.1} parent=11 // pred_region
          _
        $region24: #{state_predictor_forward.1} parent=11 // pred_fallthru
          _
        // Predicated region
        $region25: #{state_predictor_forward.1} parent=11 // pred_check
          %p267 = pneg %p154
        $region26: #{state_predictor_forward.1} parent=11 // pred_check_branch
          %269 = sbr.rel (%p267) target = $region28
        $region27: #{state_predictor_forward.1} parent=11 // pred_region
          _
        $region28: #{state_predictor_forward.1} parent=11 // pred_fallthru
          _
        // Predicated region
        $region29: #{state_predictor_forward.1} parent=11 // pred_check
          %p270 = pneg %p175
        $region30: #{state_predictor_forward.1} parent=11 // pred_check_branch
          %272 = sbr.rel (%p270) target = $region32
        $region31: #{state_predictor_forward.1} parent=11 // pred_region
          _
        $region32: #{state_predictor_forward.1} parent=11 // pred_fallthru
          _
        // Predicated region
        $region33: #{state_predictor_forward.1} parent=11 // pred_check
          %p273 = pneg %p196
        $region34: #{state_predictor_forward.1} parent=11 // pred_check_branch
          %275 = sbr.rel (%p273) target = $region36
        $region35: #{state_predictor_forward.1} parent=11 // pred_region
          _
        $region36: #{state_predictor_forward.1} parent=11 // pred_fallthru
          _
        // Predicated region
        $region37: #{state_predictor_forward.1} parent=11 // pred_check
          %p276 = pneg %p217
        $region38: #{state_predictor_forward.1} parent=11 // pred_check_branch
          %278 = sbr.rel (%p276) target = $region40
        $region39: #{state_predictor_forward.1} parent=11 // pred_region
          _
        $region40: #{state_predictor_forward.1} parent=11 // pred_fallthru
          _
      $region12: #{state_predictor_forward.1} parent=5 // pred_fallthru
        _
      %p279 = scmp.lt.s32.totalorder %s18, 8
      // Predicated region
      $region41: #{state_predictor_forward.1} parent=5 // pred_check
        %p280 = pneg %p279
      $region42: #{state_predictor_forward.1} parent=5 // pred_check_branch
        %282 = sbr.rel (%p280) target = $region44
      $region43: #{state_predictor_forward.1} parent=5 // pred_region
        // Predicated region
        $region45: #{state_predictor_forward.1} parent=43 // pred_check
          %p283 = pneg %p38
        $region46: #{state_predictor_forward.1} parent=43 // pred_check_branch
          %285 = sbr.rel (%p283) target = $region48
        $region47: #{state_predictor_forward.1} parent=43 // pred_region
          %s286 = smul.u32 128, %s18
          %p287 = scmp.lt.s32.totalorder %s286, 1023
          %s288 = scalar_select %p287, %s286, 1023
          %s289 = smul.addr %s288, 8
          %s290 = scalar_lea.vmem %s0, %s289
          %s291 = smul.u32 128, %s18
        $region48: #{state_predictor_forward.1} parent=43 // pred_fallthru
          _
        // Predicated region
        $region49: #{state_predictor_forward.1} parent=43 // pred_check
          %p292 = pneg %p64
        $region50: #{state_predictor_forward.1} parent=43 // pred_check_branch
          %294 = sbr.rel (%p292) target = $region52
        $region51: #{state_predictor_forward.1} parent=43 // pred_region
          %s295 = smul.u32 128, %s18
          %p296 = scmp.lt.s32.totalorder %s295, 1023
          %s297 = scalar_select %p296, %s295, 1023
          %s298 = smul.addr %s297, 8
          %s299 = scalar_lea.vmem %s1, %s298
          %s300 = smul.u32 128, %s18
        $region52: #{state_predictor_forward.1} parent=43 // pred_fallthru
          _
      $region44: #{state_predictor_forward.1} parent=5 // pred_fallthru
        _
      %p301 = scmp.le.s32.totalorder 1, %s18
      %p302 = scmp.lt.s32.totalorder %s18, 9
      %p303 = pnand %p301, %p302
      %p304 = pneg %p303
      // Predicated region
      $region53: #{state_predictor_forward.1} parent=5 // pred_check
        _
      $region54: #{state_predictor_forward.1} parent=5 // pred_check_branch
        %306 = sbr.rel (%p303) target = $region56
      $region55: #{state_predictor_forward.1} parent=5 // pred_region
        %s307 = ssub.s32 %s18, 1
        %s308 = smul.u32 128, %s23
        %p309 = scmp.lt.s32.totalorder %s308, 1023
        %s310 = scalar_select %p309, %s308, 1023
        %s311 = smul.addr %s310, 8
        %s312 = scalar_lea.vmem %s0, %s311
        %p313 = pneg %p44
        %p314 = pneg %p41
        %s315 = smul.u32 128, %s23
        %p316 = scmp.lt.s32.totalorder %s315, 1023
        %s317 = scalar_select %p316, %s315, 1023
        %s318 = smul.addr %s317, 8
        %s319 = scalar_lea.vmem %s1, %s318
        %p320 = pneg %p70
        %p321 = pneg %p67
        %p322 = pneg %p91
        %p323 = pneg %p88
        %p324 = pneg %p112
        %p325 = pneg %p109
        %p326 = pneg %p133
        %p327 = pneg %p130
        %p328 = pneg %p154
        %p329 = pneg %p151
        %p330 = pneg %p175
        %p331 = pneg %p172
        %p332 = pneg %p196
        %p333 = pneg %p193
        %p334 = pneg %p217
        %p335 = pneg %p214
        %p336 = pneg %p243
        %p337 = pneg %p240
        %s338 = sand.u32 %s230, 1
        %s339 = scalar_lea.sflag [#allocation3], %s338
        %s340 = sand.u32 %s230, 1
        %s341 = smul.addr %s340, 64
        %s342 = scalar_lea.vmem [#allocation2], %s341
        %s343 = smul.u32 128, %s23
        %p344 = scmp.lt.s32.totalorder %s343, 1023
        %s345 = scalar_select %p344, %s343, 1023
        %s346 = smul.addr %s345, 8
        %s347 = scalar_lea.vmem %s0, %s346
        %s348 = smul.u32 128, %s23
        %s349 = smul.u32 128, %s23
        %p350 = scmp.lt.s32.totalorder %s349, 1023
        %s351 = scalar_select %p350, %s349, 1023
        %s352 = smul.addr %s351, 8
        %s353 = scalar_lea.vmem %s1, %s352
        %s354 = smul.u32 128, %s23
        %s355 = smul.u32 8, %s23
        %v356 = vld [vmem:[%s347] sm:$0xff]
        %v357 = vld [vmem:[%s347 + $0x8] sm:$0xff]
        %v358 = vld [vmem:[%s347 + $0x10] sm:$0xff]
        %v359 = vld [vmem:[%s347 + $0x18] sm:$0xff]
        %v360 = vld [vmem:[%s347 + $0x20] sm:$0xff]
        %v361 = vld [vmem:[%s347 + $0x28] sm:$0xff]
        %v362 = vld [vmem:[%s347 + $0x30] sm:$0xff]
        %v363 = vld [vmem:[%s347 + $0x38] sm:$0xff]
        %v364 = vld [vmem:[%s347 + $0x40] sm:$0xff]
        %v365 = vld [vmem:[%s347 + $0x48] sm:$0xff]
        %v366 = vld [vmem:[%s347 + $0x50] sm:$0xff]
        %v367 = vld [vmem:[%s347 + $0x58] sm:$0xff]
        %v368 = vld [vmem:[%s347 + $0x60] sm:$0xff]
        %v369 = vld [vmem:[%s347 + $0x68] sm:$0xff]
        %v370 = vld [vmem:[%s347 + $0x70] sm:$0xff]
        %v371 = vld [vmem:[%s347 + $0x78] sm:$0xff]
        %v372 = vld [vmem:[%s347 + $0x80] sm:$0xff]
        %v373 = vld [vmem:[%s347 + $0x88] sm:$0xff]
        %v374 = vld [vmem:[%s347 + $0x90] sm:$0xff]
        %v375 = vld [vmem:[%s347 + $0x98] sm:$0xff]
        %v376 = vld [vmem:[%s347 + $0xa0] sm:$0xff]
        %v377 = vld [vmem:[%s347 + $0xa8] sm:$0xff]
        %v378 = vld [vmem:[%s347 + $0xb0] sm:$0xff]
        %v379 = vld [vmem:[%s347 + $0xb8] sm:$0xff]
        %v380 = vld [vmem:[%s347 + $0xc0] sm:$0xff]
        %v381 = vld [vmem:[%s347 + $0xc8] sm:$0xff]
        %v382 = vld [vmem:[%s347 + $0xd0] sm:$0xff]
        %v383 = vld [vmem:[%s347 + $0xd8] sm:$0xff]
        %v384 = vld [vmem:[%s347 + $0xe0] sm:$0xff]
        %v385 = vld [vmem:[%s347 + $0xe8] sm:$0xff]
        %v386 = vld [vmem:[%s347 + $0xf0] sm:$0xff]
        %v387 = vld [vmem:[%s347 + $0xf8] sm:$0xff]
        %v388 = vld [vmem:[%s347 + $0x100] sm:$0xff]
        %v389 = vld [vmem:[%s347 + $0x108] sm:$0xff]
        %v390 = vld [vmem:[%s347 + $0x110] sm:$0xff]
        %v391 = vld [vmem:[%s347 + $0x118] sm:$0xff]
        %v392 = vld [vmem:[%s347 + $0x120] sm:$0xff]
        %v393 = vld [vmem:[%s347 + $0x128] sm:$0xff]
        %v394 = vld [vmem:[%s347 + $0x130] sm:$0xff]
        %v395 = vld [vmem:[%s347 + $0x138] sm:$0xff]
        %v396 = vld [vmem:[%s347 + $0x140] sm:$0xff]
        %v397 = vld [vmem:[%s347 + $0x148] sm:$0xff]
        %v398 = vld [vmem:[%s347 + $0x150] sm:$0xff]
        %v399 = vld [vmem:[%s347 + $0x158] sm:$0xff]
        %v400 = vld [vmem:[%s347 + $0x160] sm:$0xff]
        %v401 = vld [vmem:[%s347 + $0x168] sm:$0xff]
        %v402 = vld [vmem:[%s347 + $0x170] sm:$0xff]
        %v403 = vld [vmem:[%s347 + $0x178] sm:$0xff]
        %v404 = vld [vmem:[%s347 + $0x180] sm:$0xff]
        %v405 = vld [vmem:[%s347 + $0x188] sm:$0xff]
        %v406 = vld [vmem:[%s347 + $0x190] sm:$0xff]
        %v407 = vld [vmem:[%s347 + $0x198] sm:$0xff]
        %v408 = vld [vmem:[%s347 + $0x1a0] sm:$0xff]
        %v409 = vld [vmem:[%s347 + $0x1a8] sm:$0xff]
        %v410 = vld [vmem:[%s347 + $0x1b0] sm:$0xff]
        %v411 = vld [vmem:[%s347 + $0x1b8] sm:$0xff]
        %v412 = vld [vmem:[%s347 + $0x1c0] sm:$0xff]
        %v413 = vld [vmem:[%s347 + $0x1c8] sm:$0xff]
        %v414 = vld [vmem:[%s347 + $0x1d0] sm:$0xff]
        %v415 = vld [vmem:[%s347 + $0x1d8] sm:$0xff]
        %v416 = vld [vmem:[%s347 + $0x1e0] sm:$0xff]
        %v417 = vld [vmem:[%s347 + $0x1e8] sm:$0xff]
        %v418 = vld [vmem:[%s347 + $0x1f0] sm:$0xff]
        %v419 = vld [vmem:[%s347 + $0x1f8] sm:$0xff]
        %v420 = vld [vmem:[%s347 + $0x200] sm:$0xff]
        %v421 = vld [vmem:[%s347 + $0x208] sm:$0xff]
        %v422 = vld [vmem:[%s347 + $0x210] sm:$0xff]
        %v423 = vld [vmem:[%s347 + $0x218] sm:$0xff]
        %v424 = vld [vmem:[%s347 + $0x220] sm:$0xff]
        %v425 = vld [vmem:[%s347 + $0x228] sm:$0xff]
        %v426 = vld [vmem:[%s347 + $0x230] sm:$0xff]
        %v427 = vld [vmem:[%s347 + $0x238] sm:$0xff]
        %v428 = vld [vmem:[%s347 + $0x240] sm:$0xff]
        %v429 = vld [vmem:[%s347 + $0x248] sm:$0xff]
        %v430 = vld [vmem:[%s347 + $0x250] sm:$0xff]
        %v431 = vld [vmem:[%s347 + $0x258] sm:$0xff]
        %v432 = vld [vmem:[%s347 + $0x260] sm:$0xff]
        %v433 = vld [vmem:[%s347 + $0x268] sm:$0xff]
        %v434 = vld [vmem:[%s347 + $0x270] sm:$0xff]
        %v435 = vld [vmem:[%s347 + $0x278] sm:$0xff]
        %v436 = vld [vmem:[%s347 + $0x280] sm:$0xff]
        %v437 = vld [vmem:[%s347 + $0x288] sm:$0xff]
        %v438 = vld [vmem:[%s347 + $0x290] sm:$0xff]
        %v439 = vld [vmem:[%s347 + $0x298] sm:$0xff]
        %v440 = vld [vmem:[%s347 + $0x2a0] sm:$0xff]
        %v441 = vld [vmem:[%s347 + $0x2a8] sm:$0xff]
        %v442 = vld [vmem:[%s347 + $0x2b0] sm:$0xff]
        %v443 = vld [vmem:[%s347 + $0x2b8] sm:$0xff]
        %v444 = vld [vmem:[%s347 + $0x2c0] sm:$0xff]
        %v445 = vld [vmem:[%s347 + $0x2c8] sm:$0xff]
        %v446 = vld [vmem:[%s347 + $0x2d0] sm:$0xff]
        %v447 = vld [vmem:[%s347 + $0x2d8] sm:$0xff]
        %v448 = vld [vmem:[%s347 + $0x2e0] sm:$0xff]
        %v449 = vld [vmem:[%s347 + $0x2e8] sm:$0xff]
        %v450 = vld [vmem:[%s347 + $0x2f0] sm:$0xff]
        %v451 = vld [vmem:[%s347 + $0x2f8] sm:$0xff]
        %v452 = vld [vmem:[%s347 + $0x300] sm:$0xff]
        %v453 = vld [vmem:[%s347 + $0x308] sm:$0xff]
        %v454 = vld [vmem:[%s347 + $0x310] sm:$0xff]
        %v455 = vld [vmem:[%s347 + $0x318] sm:$0xff]
        %v456 = vld [vmem:[%s347 + $0x320] sm:$0xff]
        %v457 = vld [vmem:[%s347 + $0x328] sm:$0xff]
        %v458 = vld [vmem:[%s347 + $0x330] sm:$0xff]
        %v459 = vld [vmem:[%s347 + $0x338] sm:$0xff]
        %v460 = vld [vmem:[%s347 + $0x340] sm:$0xff]
        %v461 = vld [vmem:[%s347 + $0x348] sm:$0xff]
        %v462 = vld [vmem:[%s347 + $0x350] sm:$0xff]
        %v463 = vld [vmem:[%s347 + $0x358] sm:$0xff]
        %v464 = vld [vmem:[%s347 + $0x360] sm:$0xff]
        %v465 = vld [vmem:[%s347 + $0x368] sm:$0xff]
        %v466 = vld [vmem:[%s347 + $0x370] sm:$0xff]
        %v467 = vld [vmem:[%s347 + $0x378] sm:$0xff]
        %v468 = vld [vmem:[%s347 + $0x380] sm:$0xff]
        %v469 = vld [vmem:[%s347 + $0x388] sm:$0xff]
        %v470 = vld [vmem:[%s347 + $0x390] sm:$0xff]
        %v471 = vld [vmem:[%s347 + $0x398] sm:$0xff]
        %v472 = vld [vmem:[%s347 + $0x3a0] sm:$0xff]
        %v473 = vld [vmem:[%s347 + $0x3a8] sm:$0xff]
        %v474 = vld [vmem:[%s347 + $0x3b0] sm:$0xff]
        %v475 = vld [vmem:[%s347 + $0x3b8] sm:$0xff]
        %v476 = vld [vmem:[%s347 + $0x3c0] sm:$0xff]
        %v477 = vld [vmem:[%s347 + $0x3c8] sm:$0xff]
        %v478 = vld [vmem:[%s347 + $0x3d0] sm:$0xff]
        %v479 = vld [vmem:[%s347 + $0x3d8] sm:$0xff]
        %v480 = vld [vmem:[%s347 + $0x3e0] sm:$0xff]
        %v481 = vld [vmem:[%s347 + $0x3e8] sm:$0xff]
        %v482 = vld [vmem:[%s347 + $0x3f0] sm:$0xff]
        %v483 = vld [vmem:[%s347 + $0x3f8] sm:$0xff]
        %v484 = vld [vmem:[%s353] sm:$0xff]
        %v485 = vld [vmem:[%s353 + $0x8] sm:$0xff]
        %v486 = vld [vmem:[%s353 + $0x10] sm:$0xff]
        %v487 = vld [vmem:[%s353 + $0x18] sm:$0xff]
        %v488 = vld [vmem:[%s353 + $0x20] sm:$0xff]
        %v489 = vld [vmem:[%s353 + $0x28] sm:$0xff]
        %v490 = vld [vmem:[%s353 + $0x30] sm:$0xff]
        %v491 = vld [vmem:[%s353 + $0x38] sm:$0xff]
        %v492 = vld [vmem:[%s353 + $0x40] sm:$0xff]
        %v493 = vld [vmem:[%s353 + $0x48] sm:$0xff]
        %v494 = vld [vmem:[%s353 + $0x50] sm:$0xff]
        %v495 = vld [vmem:[%s353 + $0x58] sm:$0xff]
        %v496 = vld [vmem:[%s353 + $0x60] sm:$0xff]
        %v497 = vld [vmem:[%s353 + $0x68] sm:$0xff]
        %v498 = vld [vmem:[%s353 + $0x70] sm:$0xff]
        %v499 = vld [vmem:[%s353 + $0x78] sm:$0xff]
        %v500 = vld [vmem:[%s353 + $0x80] sm:$0xff]
        %v501 = vld [vmem:[%s353 + $0x88] sm:$0xff]
        %v502 = vld [vmem:[%s353 + $0x90] sm:$0xff]
        %v503 = vld [vmem:[%s353 + $0x98] sm:$0xff]
        %v504 = vld [vmem:[%s353 + $0xa0] sm:$0xff]
        %v505 = vld [vmem:[%s353 + $0xa8] sm:$0xff]
        %v506 = vld [vmem:[%s353 + $0xb0] sm:$0xff]
        %v507 = vld [vmem:[%s353 + $0xb8] sm:$0xff]
        %v508 = vld [vmem:[%s353 + $0xc0] sm:$0xff]
        %v509 = vld [vmem:[%s353 + $0xc8] sm:$0xff]
        %v510 = vld [vmem:[%s353 + $0xd0] sm:$0xff]
        %v511 = vld [vmem:[%s353 + $0xd8] sm:$0xff]
        %v512 = vld [vmem:[%s353 + $0xe0] sm:$0xff]
        %v513 = vld [vmem:[%s353 + $0xe8] sm:$0xff]
        %v514 = vld [vmem:[%s353 + $0xf0] sm:$0xff]
        %v515 = vld [vmem:[%s353 + $0xf8] sm:$0xff]
        %v516 = vld [vmem:[%s353 + $0x100] sm:$0xff]
        %v517 = vld [vmem:[%s353 + $0x108] sm:$0xff]
        %v518 = vld [vmem:[%s353 + $0x110] sm:$0xff]
        %v519 = vld [vmem:[%s353 + $0x118] sm:$0xff]
        %v520 = vld [vmem:[%s353 + $0x120] sm:$0xff]
        %v521 = vld [vmem:[%s353 + $0x128] sm:$0xff]
        %v522 = vld [vmem:[%s353 + $0x130] sm:$0xff]
        %v523 = vld [vmem:[%s353 + $0x138] sm:$0xff]
        %v524 = vld [vmem:[%s353 + $0x140] sm:$0xff]
        %v525 = vld [vmem:[%s353 + $0x148] sm:$0xff]
        %v526 = vld [vmem:[%s353 + $0x150] sm:$0xff]
        %v527 = vld [vmem:[%s353 + $0x158] sm:$0xff]
        %v528 = vld [vmem:[%s353 + $0x160] sm:$0xff]
        %v529 = vld [vmem:[%s353 + $0x168] sm:$0xff]
        %v530 = vld [vmem:[%s353 + $0x170] sm:$0xff]
        %v531 = vld [vmem:[%s353 + $0x178] sm:$0xff]
        %v532 = vld [vmem:[%s353 + $0x180] sm:$0xff]
        %v533 = vld [vmem:[%s353 + $0x188] sm:$0xff]
        %v534 = vld [vmem:[%s353 + $0x190] sm:$0xff]
        %v535 = vld [vmem:[%s353 + $0x198] sm:$0xff]
        %v536 = vld [vmem:[%s353 + $0x1a0] sm:$0xff]
        %v537 = vld [vmem:[%s353 + $0x1a8] sm:$0xff]
        %v538 = vld [vmem:[%s353 + $0x1b0] sm:$0xff]
        %v539 = vld [vmem:[%s353 + $0x1b8] sm:$0xff]
        %v540 = vld [vmem:[%s353 + $0x1c0] sm:$0xff]
        %v541 = vld [vmem:[%s353 + $0x1c8] sm:$0xff]
        %v542 = vld [vmem:[%s353 + $0x1d0] sm:$0xff]
        %v543 = vld [vmem:[%s353 + $0x1d8] sm:$0xff]
        %v544 = vld [vmem:[%s353 + $0x1e0] sm:$0xff]
        %v545 = vld [vmem:[%s353 + $0x1e8] sm:$0xff]
        %v546 = vld [vmem:[%s353 + $0x1f0] sm:$0xff]
        %v547 = vld [vmem:[%s353 + $0x1f8] sm:$0xff]
        %v548 = vld [vmem:[%s353 + $0x200] sm:$0xff]
        %v549 = vld [vmem:[%s353 + $0x208] sm:$0xff]
        %v550 = vld [vmem:[%s353 + $0x210] sm:$0xff]
        %v551 = vld [vmem:[%s353 + $0x218] sm:$0xff]
        %v552 = vld [vmem:[%s353 + $0x220] sm:$0xff]
        %v553 = vld [vmem:[%s353 + $0x228] sm:$0xff]
        %v554 = vld [vmem:[%s353 + $0x230] sm:$0xff]
        %v555 = vld [vmem:[%s353 + $0x238] sm:$0xff]
        %v556 = vld [vmem:[%s353 + $0x240] sm:$0xff]
        %v557 = vld [vmem:[%s353 + $0x248] sm:$0xff]
        %v558 = vld [vmem:[%s353 + $0x250] sm:$0xff]
        %v559 = vld [vmem:[%s353 + $0x258] sm:$0xff]
        %v560 = vld [vmem:[%s353 + $0x260] sm:$0xff]
        %v561 = vld [vmem:[%s353 + $0x268] sm:$0xff]
        %v562 = vld [vmem:[%s353 + $0x270] sm:$0xff]
        %v563 = vld [vmem:[%s353 + $0x278] sm:$0xff]
        %v564 = vld [vmem:[%s353 + $0x280] sm:$0xff]
        %v565 = vld [vmem:[%s353 + $0x288] sm:$0xff]
        %v566 = vld [vmem:[%s353 + $0x290] sm:$0xff]
        %v567 = vld [vmem:[%s353 + $0x298] sm:$0xff]
        %v568 = vld [vmem:[%s353 + $0x2a0] sm:$0xff]
        %v569 = vld [vmem:[%s353 + $0x2a8] sm:$0xff]
        %v570 = vld [vmem:[%s353 + $0x2b0] sm:$0xff]
        %v571 = vld [vmem:[%s353 + $0x2b8] sm:$0xff]
        %v572 = vld [vmem:[%s353 + $0x2c0] sm:$0xff]
        %v573 = vld [vmem:[%s353 + $0x2c8] sm:$0xff]
        %v574 = vld [vmem:[%s353 + $0x2d0] sm:$0xff]
        %v575 = vld [vmem:[%s353 + $0x2d8] sm:$0xff]
        %v576 = vld [vmem:[%s353 + $0x2e0] sm:$0xff]
        %v577 = vld [vmem:[%s353 + $0x2e8] sm:$0xff]
        %v578 = vld [vmem:[%s353 + $0x2f0] sm:$0xff]
        %v579 = vld [vmem:[%s353 + $0x2f8] sm:$0xff]
        %v580 = vld [vmem:[%s353 + $0x300] sm:$0xff]
        %v581 = vld [vmem:[%s353 + $0x308] sm:$0xff]
        %v582 = vld [vmem:[%s353 + $0x310] sm:$0xff]
        %v583 = vld [vmem:[%s353 + $0x318] sm:$0xff]
        %v584 = vld [vmem:[%s353 + $0x320] sm:$0xff]
        %v585 = vld [vmem:[%s353 + $0x328] sm:$0xff]
        %v586 = vld [vmem:[%s353 + $0x330] sm:$0xff]
        %v587 = vld [vmem:[%s353 + $0x338] sm:$0xff]
        %v588 = vld [vmem:[%s353 + $0x340] sm:$0xff]
        %v589 = vld [vmem:[%s353 + $0x348] sm:$0xff]
        %v590 = vld [vmem:[%s353 + $0x350] sm:$0xff]
        %v591 = vld [vmem:[%s353 + $0x358] sm:$0xff]
        %v592 = vld [vmem:[%s353 + $0x360] sm:$0xff]
        %v593 = vld [vmem:[%s353 + $0x368] sm:$0xff]
        %v594 = vld [vmem:[%s353 + $0x370] sm:$0xff]
        %v595 = vld [vmem:[%s353 + $0x378] sm:$0xff]
        %v596 = vld [vmem:[%s353 + $0x380] sm:$0xff]
        %v597 = vld [vmem:[%s353 + $0x388] sm:$0xff]
        %v598 = vld [vmem:[%s353 + $0x390] sm:$0xff]
        %v599 = vld [vmem:[%s353 + $0x398] sm:$0xff]
        %v600 = vld [vmem:[%s353 + $0x3a0] sm:$0xff]
        %v601 = vld [vmem:[%s353 + $0x3a8] sm:$0xff]
        %v602 = vld [vmem:[%s353 + $0x3b0] sm:$0xff]
        %v603 = vld [vmem:[%s353 + $0x3b8] sm:$0xff]
        %v604 = vld [vmem:[%s353 + $0x3c0] sm:$0xff]
        %v605 = vld [vmem:[%s353 + $0x3c8] sm:$0xff]
        %v606 = vld [vmem:[%s353 + $0x3d0] sm:$0xff]
        %v607 = vld [vmem:[%s353 + $0x3d8] sm:$0xff]
        %v608 = vld [vmem:[%s353 + $0x3e0] sm:$0xff]
        %v609 = vld [vmem:[%s353 + $0x3e8] sm:$0xff]
        %v610 = vld [vmem:[%s353 + $0x3f0] sm:$0xff]
        %v611 = vld [vmem:[%s353 + $0x3f8] sm:$0xff]
        %v612 = vld [vmem:[%s2] sm:$0xff]
        %v613 = vld [vmem:[%s2 + $0x8] sm:$0xff]
        %v614 = vld [vmem:[%s2 + $0x10] sm:$0xff]
        %v615 = vld [vmem:[%s2 + $0x18] sm:$0xff]
        %v616 = vld [vmem:[%s3] sm:$0xff]
        %v617 = vld [vmem:[%s3 + $0x8] sm:$0xff]
        %v618 = vld [vmem:[%s3 + $0x10] sm:$0xff]
        %v619 = vld [vmem:[%s3 + $0x18] sm:$0xff]
        %vm620 = vcmask 31744
        %v622 = vsel %vm620, %v616, 0
        %v625 = vsel %vm620, %v617, 0
        %v628 = vsel %vm620, %v618, 0
        %v631 = vsel %vm620, %v619, 0
        %v634 = vsel %vm620, %v484, 0
        %v637 = vsel %vm620, %v485, 0
        %v640 = vsel %vm620, %v486, 0
        %v643 = vsel %vm620, %v487, 0
        %v646 = vsel %vm620, %v488, 0
        %v649 = vsel %vm620, %v489, 0
        %v652 = vsel %vm620, %v490, 0
        %v655 = vsel %vm620, %v491, 0
        %v658 = vsel %vm620, %v492, 0
        %v661 = vsel %vm620, %v493, 0
        %v664 = vsel %vm620, %v494, 0
        %v667 = vsel %vm620, %v495, 0
        %v670 = vsel %vm620, %v496, 0
        %v673 = vsel %vm620, %v497, 0
        %v676 = vsel %vm620, %v498, 0
        %v679 = vsel %vm620, %v499, 0
        %v682 = vsel %vm620, %v500, 0
        %v685 = vsel %vm620, %v501, 0
        %v688 = vsel %vm620, %v502, 0
        %v691 = vsel %vm620, %v503, 0
        %v694 = vsel %vm620, %v504, 0
        %v697 = vsel %vm620, %v505, 0
        %v700 = vsel %vm620, %v506, 0
        %v703 = vsel %vm620, %v507, 0
        %v706 = vsel %vm620, %v508, 0
        %v709 = vsel %vm620, %v509, 0
        %v712 = vsel %vm620, %v510, 0
        %v715 = vsel %vm620, %v511, 0
        %v718 = vsel %vm620, %v512, 0
        %v721 = vsel %vm620, %v513, 0
        %v724 = vsel %vm620, %v514, 0
        %v727 = vsel %vm620, %v515, 0
        %v730 = vsel %vm620, %v516, 0
        %v733 = vsel %vm620, %v517, 0
        %v736 = vsel %vm620, %v518, 0
        %v739 = vsel %vm620, %v519, 0
        %v742 = vsel %vm620, %v520, 0
        %v745 = vsel %vm620, %v521, 0
        %v748 = vsel %vm620, %v522, 0
        %v751 = vsel %vm620, %v523, 0
        %v754 = vsel %vm620, %v524, 0
        %v757 = vsel %vm620, %v525, 0
        %v760 = vsel %vm620, %v526, 0
        %v763 = vsel %vm620, %v527, 0
        %v766 = vsel %vm620, %v528, 0
        %v769 = vsel %vm620, %v529, 0
        %v772 = vsel %vm620, %v530, 0
        %v775 = vsel %vm620, %v531, 0
        %v778 = vsel %vm620, %v532, 0
        %v781 = vsel %vm620, %v533, 0
        %v784 = vsel %vm620, %v534, 0
        %v787 = vsel %vm620, %v535, 0
        %v790 = vsel %vm620, %v536, 0
        %v793 = vsel %vm620, %v537, 0
        %v796 = vsel %vm620, %v538, 0
        %v799 = vsel %vm620, %v539, 0
        %v802 = vsel %vm620, %v540, 0
        %v805 = vsel %vm620, %v541, 0
        %v808 = vsel %vm620, %v542, 0
        %v811 = vsel %vm620, %v543, 0
        %v814 = vsel %vm620, %v544, 0
        %v817 = vsel %vm620, %v545, 0
        %v820 = vsel %vm620, %v546, 0
        %v823 = vsel %vm620, %v547, 0
        %v826 = vsel %vm620, %v548, 0
        %v829 = vsel %vm620, %v549, 0
        %v832 = vsel %vm620, %v550, 0
        %v835 = vsel %vm620, %v551, 0
        %v838 = vsel %vm620, %v552, 0
        %v841 = vsel %vm620, %v553, 0
        %v844 = vsel %vm620, %v554, 0
        %v847 = vsel %vm620, %v555, 0
        %v850 = vsel %vm620, %v556, 0
        %v853 = vsel %vm620, %v557, 0
        %v856 = vsel %vm620, %v558, 0
        %v859 = vsel %vm620, %v559, 0
        %v862 = vsel %vm620, %v560, 0
        %v865 = vsel %vm620, %v561, 0
        %v868 = vsel %vm620, %v562, 0
        %v871 = vsel %vm620, %v563, 0
        %v874 = vsel %vm620, %v564, 0
        %v877 = vsel %vm620, %v565, 0
        %v880 = vsel %vm620, %v566, 0
        %v883 = vsel %vm620, %v567, 0
        %v886 = vsel %vm620, %v568, 0
        %v889 = vsel %vm620, %v569, 0
        %v892 = vsel %vm620, %v570, 0
        %v895 = vsel %vm620, %v571, 0
        %v898 = vsel %vm620, %v572, 0
        %v901 = vsel %vm620, %v573, 0
        %v904 = vsel %vm620, %v574, 0
        %v907 = vsel %vm620, %v575, 0
        %v910 = vsel %vm620, %v576, 0
        %v913 = vsel %vm620, %v577, 0
        %v916 = vsel %vm620, %v578, 0
        %v919 = vsel %vm620, %v579, 0
        %v922 = vsel %vm620, %v580, 0
        %v925 = vsel %vm620, %v581, 0
        %v928 = vsel %vm620, %v582, 0
        %v931 = vsel %vm620, %v583, 0
        %v934 = vsel %vm620, %v584, 0
        %v937 = vsel %vm620, %v585, 0
        %v940 = vsel %vm620, %v586, 0
        %v943 = vsel %vm620, %v587, 0
        %v946 = vsel %vm620, %v588, 0
        %v949 = vsel %vm620, %v589, 0
        %v952 = vsel %vm620, %v590, 0
        %v955 = vsel %vm620, %v591, 0
        %v958 = vsel %vm620, %v592, 0
        %v961 = vsel %vm620, %v593, 0
        %v964 = vsel %vm620, %v594, 0
        %v967 = vsel %vm620, %v595, 0
        %v970 = vsel %vm620, %v596, 0
        %v973 = vsel %vm620, %v597, 0
        %v976 = vsel %vm620, %v598, 0
        %v979 = vsel %vm620, %v599, 0
        %v982 = vsel %vm620, %v600, 0
        %v985 = vsel %vm620, %v601, 0
        %v988 = vsel %vm620, %v602, 0
        %v991 = vsel %vm620, %v603, 0
        %v994 = vsel %vm620, %v604, 0
        %v997 = vsel %vm620, %v605, 0
        %v1000 = vsel %vm620, %v606, 0
        %v1003 = vsel %vm620, %v607, 0
        %v1006 = vsel %vm620, %v608, 0
        %v1009 = vsel %vm620, %v609, 0
        %v1012 = vsel %vm620, %v610, 0
        %v1015 = vsel %vm620, %v611, 0
        %1017 = vmatprep.subr.mxu0 0.0
        %1018 = vmatpush1.xpose.msra.mxu0 %v634
        %1019 = vmatprep.subr.mxu0 0.0
        %1020 = vmatpush1.xpose.msra.mxu0 %v637
        %1021 = vmatprep.subr.mxu0 0.0
        %1022 = vmatpush1.xpose.msra.mxu0 %v640
        %1023 = vmatprep.subr.mxu0 0.0
        %1024 = vmatpush1.xpose.msra.mxu0 %v643
        %1025 = vmatprep.subr.mxu0 0.0
        %1026 = vmatpush1.xpose.msra.mxu0 %v646
        %1027 = vmatprep.subr.mxu0 0.0
        %1028 = vmatpush1.xpose.msra.mxu0 %v649
        %1029 = vmatprep.subr.mxu0 0.0
        %1030 = vmatpush1.xpose.msra.mxu0 %v652
        %1031 = vmatprep.subr.mxu0 0.0
        %1032 = vmatpush1.xpose.msra.mxu0 %v655
        %1033 = vmatprep.subr.mxu0 0.0
        %1034 = vmatpush1.xpose.msra.mxu0 %v658
        %1035 = vmatprep.subr.mxu0 0.0
        %1036 = vmatpush1.xpose.msra.mxu0 %v661
        %1037 = vmatprep.subr.mxu0 0.0
        %1038 = vmatpush1.xpose.msra.mxu0 %v664
        %1039 = vmatprep.subr.mxu0 0.0
        %1040 = vmatpush1.xpose.msra.mxu0 %v667
        %1041 = vmatprep.subr.mxu0 0.0
        %1042 = vmatpush1.xpose.msra.mxu0 %v670
        %1043 = vmatprep.subr.mxu0 0.0
        %1044 = vmatpush1.xpose.msra.mxu0 %v673
        %1045 = vmatprep.subr.mxu0 0.0
        %1046 = vmatpush1.xpose.msra.mxu0 %v676
        %1047 = vmatprep.subr.mxu0 0.0
        %1048 = vmatpush1.xpose.msra.mxu0 %v679
        %1049 = vmatprep.subr.mxu0 0.0
        %1050 = vmatpush1.xpose.msra.mxu0 %v682
        %1051 = vmatprep.subr.mxu0 0.0
        %1052 = vmatpush1.xpose.msra.mxu0 %v685
        %1053 = vmatprep.subr.mxu0 0.0
        %1054 = vmatpush1.xpose.msra.mxu0 %v688
        %1055 = vmatprep.subr.mxu0 0.0
        %1056 = vmatpush1.xpose.msra.mxu0 %v691
        %1057 = vmatprep.subr.mxu0 0.0
        %1058 = vmatpush1.xpose.msra.mxu0 %v694
        %1059 = vmatprep.subr.mxu0 0.0
        %1060 = vmatpush1.xpose.msra.mxu0 %v697
        %1061 = vmatprep.subr.mxu0 0.0
        %1062 = vmatpush1.xpose.msra.mxu0 %v700
        %1063 = vmatprep.subr.mxu0 0.0
        %1064 = vmatpush1.xpose.msra.mxu0 %v703
        %1065 = vmatprep.subr.mxu0 0.0
        %1066 = vmatpush1.xpose.msra.mxu0 %v706
        %1067 = vmatprep.subr.mxu0 0.0
        %1068 = vmatpush1.xpose.msra.mxu0 %v709
        %1069 = vmatprep.subr.mxu0 0.0
        %1070 = vmatpush1.xpose.msra.mxu0 %v712
        %1071 = vmatprep.subr.mxu0 0.0
        %1072 = vmatpush1.xpose.msra.mxu0 %v715
        %1073 = vmatprep.subr.mxu0 0.0
        %1074 = vmatpush1.xpose.msra.mxu0 %v718
        %1075 = vmatprep.subr.mxu0 0.0
        %1076 = vmatpush1.xpose.msra.mxu0 %v721
        %1077 = vmatprep.subr.mxu0 0.0
        %1078 = vmatpush1.xpose.msra.mxu0 %v724
        %1079 = vmatprep.subr.mxu0 0.0
        %1080 = vmatpush1.xpose.msra.mxu0 %v727
        %1081 = vmatprep.mubr.f32.mxu0 0.0
        %1082 = vmatmul.mubr.f32.gmra.mrb[0].mxu0 %v622
        %v1083 = vpop.f32.mrb[0].mxu0
        %v1084 = vadd.f32 0.0, %v1083
        %v1085 = vpop.f32.mrb[0].mxu0
        %v1086 = vadd.f32 0.0, %v1085
        %1087 = vmatprep.mubr.f32.mxu0 0.0
        %1088 = vmatmul.mubr.f32.gmra.mrb[0].mxu0 %v625
        %v1089 = vpop.f32.mrb[0].mxu0
        %v1090 = vadd.f32 0.0, %v1089
        %v1091 = vpop.f32.mrb[0].mxu0
        %v1092 = vadd.f32 0.0, %v1091
        %1093 = vmatprep.mubr.f32.mxu0 0.0
        %1094 = vmatmul.mubr.f32.gmra.mrb[0].mxu0 %v628
        %v1095 = vpop.f32.mrb[0].mxu0
        %v1096 = vadd.f32 0.0, %v1095
        %v1097 = vpop.f32.mrb[0].mxu0
        %v1098 = vadd.f32 0.0, %v1097
        %1099 = vmatprep.mubr.f32.mxu0 0.0
        %1100 = vmatmul.mubr.f32.gmra.mrb[0].mxu0 %v631
        %v1101 = vpop.f32.mrb[0].mxu0
        %v1102 = vadd.f32 0.0, %v1101
        %v1103 = vpop.f32.mrb[0].mxu0
        %v1104 = vadd.f32 0.0, %v1103
        %1105 = vdwg.mxu0
        %1106 = vmatprep.subr.mxu0 0.0
        %1107 = vmatpush1.xpose.msra.mxu0 %v730
        %1108 = vmatprep.subr.mxu0 0.0
        %1109 = vmatpush1.xpose.msra.mxu0 %v733
        %1110 = vmatprep.subr.mxu0 0.0
        %1111 = vmatpush1.xpose.msra.mxu0 %v736
        %1112 = vmatprep.subr.mxu0 0.0
        %1113 = vmatpush1.xpose.msra.mxu0 %v739
        %1114 = vmatprep.subr.mxu0 0.0
        %1115 = vmatpush1.xpose.msra.mxu0 %v742
        %1116 = vmatprep.subr.mxu0 0.0
        %1117 = vmatpush1.xpose.msra.mxu0 %v745
        %1118 = vmatprep.subr.mxu0 0.0
        %1119 = vmatpush1.xpose.msra.mxu0 %v748
        %1120 = vmatprep.subr.mxu0 0.0
        %1121 = vmatpush1.xpose.msra.mxu0 %v751
        %1122 = vmatprep.subr.mxu0 0.0
        %1123 = vmatpush1.xpose.msra.mxu0 %v754
        %1124 = vmatprep.subr.mxu0 0.0
        %1125 = vmatpush1.xpose.msra.mxu0 %v757
        %1126 = vmatprep.subr.mxu0 0.0
        %1127 = vmatpush1.xpose.msra.mxu0 %v760
        %1128 = vmatprep.subr.mxu0 0.0
        %1129 = vmatpush1.xpose.msra.mxu0 %v763
        %1130 = vmatprep.subr.mxu0 0.0
        %1131 = vmatpush1.xpose.msra.mxu0 %v766
        %1132 = vmatprep.subr.mxu0 0.0
        %1133 = vmatpush1.xpose.msra.mxu0 %v769
        %1134 = vmatprep.subr.mxu0 0.0
        %1135 = vmatpush1.xpose.msra.mxu0 %v772
        %1136 = vmatprep.subr.mxu0 0.0
        %1137 = vmatpush1.xpose.msra.mxu0 %v775
        %1138 = vmatprep.subr.mxu0 0.0
        %1139 = vmatpush1.xpose.msra.mxu0 %v778
        %1140 = vmatprep.subr.mxu0 0.0
        %1141 = vmatpush1.xpose.msra.mxu0 %v781
        %1142 = vmatprep.subr.mxu0 0.0
        %1143 = vmatpush1.xpose.msra.mxu0 %v784
        %1144 = vmatprep.subr.mxu0 0.0
        %1145 = vmatpush1.xpose.msra.mxu0 %v787
        %1146 = vmatprep.subr.mxu0 0.0
        %1147 = vmatpush1.xpose.msra.mxu0 %v790
        %1148 = vmatprep.subr.mxu0 0.0
        %1149 = vmatpush1.xpose.msra.mxu0 %v793
        %1150 = vmatprep.subr.mxu0 0.0
        %1151 = vmatpush1.xpose.msra.mxu0 %v796
        %1152 = vmatprep.subr.mxu0 0.0
        %1153 = vmatpush1.xpose.msra.mxu0 %v799
        %1154 = vmatprep.subr.mxu0 0.0
        %1155 = vmatpush1.xpose.msra.mxu0 %v802
        %1156 = vmatprep.subr.mxu0 0.0
        %1157 = vmatpush1.xpose.msra.mxu0 %v805
        %1158 = vmatprep.subr.mxu0 0.0
        %1159 = vmatpush1.xpose.msra.mxu0 %v808
        %1160 = vmatprep.subr.mxu0 0.0
        %1161 = vmatpush1.xpose.msra.mxu0 %v811
        %1162 = vmatprep.subr.mxu0 0.0
        %1163 = vmatpush1.xpose.msra.mxu0 %v814
        %1164 = vmatprep.subr.mxu0 0.0
        %1165 = vmatpush1.xpose.msra.mxu0 %v817
        %1166 = vmatprep.subr.mxu0 0.0
        %1167 = vmatpush1.xpose.msra.mxu0 %v820
        %1168 = vmatprep.subr.mxu0 0.0
        %1169 = vmatpush1.xpose.msra.mxu0 %v823
        %1170 = vmatprep.mubr.f32.mxu0 0.0
        %1171 = vmatmul.mubr.f32.gmra.mrb[0].mxu0 %v622
        %v1172 = vpop.f32.mrb[0].mxu0
        %v1173 = vadd.f32 0.0, %v1172
        %v1174 = vpop.f32.mrb[0].mxu0
        %v1175 = vadd.f32 0.0, %v1174
        %1176 = vmatprep.mubr.f32.mxu0 0.0
        %1177 = vmatmul.mubr.f32.gmra.mrb[0].mxu0 %v625
        %v1178 = vpop.f32.mrb[0].mxu0
        %v1179 = vadd.f32 0.0, %v1178
        %v1180 = vpop.f32.mrb[0].mxu0
        %v1181 = vadd.f32 0.0, %v1180
        %1182 = vmatprep.mubr.f32.mxu0 0.0
        %1183 = vmatmul.mubr.f32.gmra.mrb[0].mxu0 %v628
        %v1184 = vpop.f32.mrb[0].mxu0
        %v1185 = vadd.f32 0.0, %v1184
        %v1186 = vpop.f32.mrb[0].mxu0
        %v1187 = vadd.f32 0.0, %v1186
        %1188 = vmatprep.mubr.f32.mxu0 0.0
        %1189 = vmatmul.mubr.f32.gmra.mrb[0].mxu0 %v631
        %v1190 = vpop.f32.mrb[0].mxu0
        %v1191 = vadd.f32 0.0, %v1190
        %v1192 = vpop.f32.mrb[0].mxu0
        %v1193 = vadd.f32 0.0, %v1192
        %1194 = vdwg.mxu0
        %1195 = vmatprep.subr.mxu0 0.0
        %1196 = vmatpush1.xpose.msra.mxu0 %v826
        %1197 = vmatprep.subr.mxu0 0.0
        %1198 = vmatpush1.xpose.msra.mxu0 %v829
        %1199 = vmatprep.subr.mxu0 0.0
        %1200 = vmatpush1.xpose.msra.mxu0 %v832
        %1201 = vmatprep.subr.mxu0 0.0
        %1202 = vmatpush1.xpose.msra.mxu0 %v835
        %1203 = vmatprep.subr.mxu0 0.0
        %1204 = vmatpush1.xpose.msra.mxu0 %v838
        %1205 = vmatprep.subr.mxu0 0.0
        %1206 = vmatpush1.xpose.msra.mxu0 %v841
        %1207 = vmatprep.subr.mxu0 0.0
        %1208 = vmatpush1.xpose.msra.mxu0 %v844
        %1209 = vmatprep.subr.mxu0 0.0
        %1210 = vmatpush1.xpose.msra.mxu0 %v847
        %1211 = vmatprep.subr.mxu0 0.0
        %1212 = vmatpush1.xpose.msra.mxu0 %v850
        %1213 = vmatprep.subr.mxu0 0.0
        %1214 = vmatpush1.xpose.msra.mxu0 %v853
        %1215 = vmatprep.subr.mxu0 0.0
        %1216 = vmatpush1.xpose.msra.mxu0 %v856
        %1217 = vmatprep.subr.mxu0 0.0
        %1218 = vmatpush1.xpose.msra.mxu0 %v859
        %1219 = vmatprep.subr.mxu0 0.0
        %1220 = vmatpush1.xpose.msra.mxu0 %v862
        %1221 = vmatprep.subr.mxu0 0.0
        %1222 = vmatpush1.xpose.msra.mxu0 %v865
        %1223 = vmatprep.subr.mxu0 0.0
        %1224 = vmatpush1.xpose.msra.mxu0 %v868
        %1225 = vmatprep.subr.mxu0 0.0
        %1226 = vmatpush1.xpose.msra.mxu0 %v871
        %1227 = vmatprep.subr.mxu0 0.0
        %1228 = vmatpush1.xpose.msra.mxu0 %v874
        %1229 = vmatprep.subr.mxu0 0.0
        %1230 = vmatpush1.xpose.msra.mxu0 %v877
        %1231 = vmatprep.subr.mxu0 0.0
        %1232 = vmatpush1.xpose.msra.mxu0 %v880
        %1233 = vmatprep.subr.mxu0 0.0
        %1234 = vmatpush1.xpose.msra.mxu0 %v883
        %1235 = vmatprep.subr.mxu0 0.0
        %1236 = vmatpush1.xpose.msra.mxu0 %v886
        %1237 = vmatprep.subr.mxu0 0.0
        %1238 = vmatpush1.xpose.msra.mxu0 %v889
        %1239 = vmatprep.subr.mxu0 0.0
        %1240 = vmatpush1.xpose.msra.mxu0 %v892
        %1241 = vmatprep.subr.mxu0 0.0
        %1242 = vmatpush1.xpose.msra.mxu0 %v895
        %1243 = vmatprep.subr.mxu0 0.0
        %1244 = vmatpush1.xpose.msra.mxu0 %v898
        %1245 = vmatprep.subr.mxu0 0.0
        %1246 = vmatpush1.xpose.msra.mxu0 %v901
        %1247 = vmatprep.subr.mxu0 0.0
        %1248 = vmatpush1.xpose.msra.mxu0 %v904
        %1249 = vmatprep.subr.mxu0 0.0
        %1250 = vmatpush1.xpose.msra.mxu0 %v907
        %1251 = vmatprep.subr.mxu0 0.0
        %1252 = vmatpush1.xpose.msra.mxu0 %v910
        %1253 = vmatprep.subr.mxu0 0.0
        %1254 = vmatpush1.xpose.msra.mxu0 %v913
        %1255 = vmatprep.subr.mxu0 0.0
        %1256 = vmatpush1.xpose.msra.mxu0 %v916
        %1257 = vmatprep.subr.mxu0 0.0
        %1258 = vmatpush1.xpose.msra.mxu0 %v919
        %1259 = vmatprep.mubr.f32.mxu0 0.0
        %1260 = vmatmul.mubr.f32.gmra.mrb[0].mxu0 %v622
        %v1261 = vpop.f32.mrb[0].mxu0
        %v1262 = vadd.f32 0.0, %v1261
        %v1263 = vpop.f32.mrb[0].mxu0
        %v1264 = vadd.f32 0.0, %v1263
        %1265 = vmatprep.mubr.f32.mxu0 0.0
        %1266 = vmatmul.mubr.f32.gmra.mrb[0].mxu0 %v625
        %v1267 = vpop.f32.mrb[0].mxu0
        %v1268 = vadd.f32 0.0, %v1267
        %v1269 = vpop.f32.mrb[0].mxu0
        %v1270 = vadd.f32 0.0, %v1269
        %1271 = vmatprep.mubr.f32.mxu0 0.0
        %1272 = vmatmul.mubr.f32.gmra.mrb[0].mxu0 %v628
        %v1273 = vpop.f32.mrb[0].mxu0
        %v1274 = vadd.f32 0.0, %v1273
        %v1275 = vpop.f32.mrb[0].mxu0
        %v1276 = vadd.f32 0.0, %v1275
        %1277 = vmatprep.mubr.f32.mxu0 0.0
        %1278 = vmatmul.mubr.f32.gmra.mrb[0].mxu0 %v631
        %v1279 = vpop.f32.mrb[0].mxu0
        %v1280 = vadd.f32 0.0, %v1279
        %v1281 = vpop.f32.mrb[0].mxu0
        %v1282 = vadd.f32 0.0, %v1281
        %1283 = vdwg.mxu0
        %1284 = vmatprep.subr.mxu0 0.0
        %1285 = vmatpush1.xpose.msra.mxu0 %v922
        %1286 = vmatprep.subr.mxu0 0.0
        %1287 = vmatpush1.xpose.msra.mxu0 %v925
        %1288 = vmatprep.subr.mxu0 0.0
        %1289 = vmatpush1.xpose.msra.mxu0 %v928
        %1290 = vmatprep.subr.mxu0 0.0
        %1291 = vmatpush1.xpose.msra.mxu0 %v931
        %1292 = vmatprep.subr.mxu0 0.0
        %1293 = vmatpush1.xpose.msra.mxu0 %v934
        %1294 = vmatprep.subr.mxu0 0.0
        %1295 = vmatpush1.xpose.msra.mxu0 %v937
        %1296 = vmatprep.subr.mxu0 0.0
        %1297 = vmatpush1.xpose.msra.mxu0 %v940
        %1298 = vmatprep.subr.mxu0 0.0
        %1299 = vmatpush1.xpose.msra.mxu0 %v943
        %1300 = vmatprep.subr.mxu0 0.0
        %1301 = vmatpush1.xpose.msra.mxu0 %v946
        %1302 = vmatprep.subr.mxu0 0.0
        %1303 = vmatpush1.xpose.msra.mxu0 %v949
        %1304 = vmatprep.subr.mxu0 0.0
        %1305 = vmatpush1.xpose.msra.mxu0 %v952
        %1306 = vmatprep.subr.mxu0 0.0
        %1307 = vmatpush1.xpose.msra.mxu0 %v955
        %1308 = vmatprep.subr.mxu0 0.0
        %1309 = vmatpush1.xpose.msra.mxu0 %v958
        %1310 = vmatprep.subr.mxu0 0.0
        %1311 = vmatpush1.xpose.msra.mxu0 %v961
        %1312 = vmatprep.subr.mxu0 0.0
        %1313 = vmatpush1.xpose.msra.mxu0 %v964
        %1314 = vmatprep.subr.mxu0 0.0
        %1315 = vmatpush1.xpose.msra.mxu0 %v967
        %1316 = vmatprep.subr.mxu0 0.0
        %1317 = vmatpush1.xpose.msra.mxu0 %v970
        %1318 = vmatprep.subr.mxu0 0.0
        %1319 = vmatpush1.xpose.msra.mxu0 %v973
        %1320 = vmatprep.subr.mxu0 0.0
        %1321 = vmatpush1.xpose.msra.mxu0 %v976
        %1322 = vmatprep.subr.mxu0 0.0
        %1323 = vmatpush1.xpose.msra.mxu0 %v979
        %1324 = vmatprep.subr.mxu0 0.0
        %1325 = vmatpush1.xpose.msra.mxu0 %v982
        %1326 = vmatprep.subr.mxu0 0.0
        %1327 = vmatpush1.xpose.msra.mxu0 %v985
        %1328 = vmatprep.subr.mxu0 0.0
        %1329 = vmatpush1.xpose.msra.mxu0 %v988
        %1330 = vmatprep.subr.mxu0 0.0
        %1331 = vmatpush1.xpose.msra.mxu0 %v991
        %1332 = vmatprep.subr.mxu0 0.0
        %1333 = vmatpush1.xpose.msra.mxu0 %v994
        %1334 = vmatprep.subr.mxu0 0.0
        %1335 = vmatpush1.xpose.msra.mxu0 %v997
        %1336 = vmatprep.subr.mxu0 0.0
        %1337 = vmatpush1.xpose.msra.mxu0 %v1000
        %1338 = vmatprep.subr.mxu0 0.0
        %1339 = vmatpush1.xpose.msra.mxu0 %v1003
        %1340 = vmatprep.subr.mxu0 0.0
        %1341 = vmatpush1.xpose.msra.mxu0 %v1006
        %1342 = vmatprep.subr.mxu0 0.0
        %1343 = vmatpush1.xpose.msra.mxu0 %v1009
        %1344 = vmatprep.subr.mxu0 0.0
        %1345 = vmatpush1.xpose.msra.mxu0 %v1012
        %1346 = vmatprep.subr.mxu0 0.0
        %1347 = vmatpush1.xpose.msra.mxu0 %v1015
        %1348 = vmatprep.mubr.f32.mxu0 0.0
        %1349 = vmatmul.mubr.f32.gmra.mrb[0].mxu0 %v622
        %v1350 = vpop.f32.mrb[0].mxu0
        %v1351 = vadd.f32 0.0, %v1350
        %v1352 = vpop.f32.mrb[0].mxu0
        %v1353 = vadd.f32 0.0, %v1352
        %1354 = vmatprep.mubr.f32.mxu0 0.0
        %1355 = vmatmul.mubr.f32.gmra.mrb[0].mxu0 %v625
        %v1356 = vpop.f32.mrb[0].mxu0
        %v1357 = vadd.f32 0.0, %v1356
        %v1358 = vpop.f32.mrb[0].mxu0
        %v1359 = vadd.f32 0.0, %v1358
        %1360 = vmatprep.mubr.f32.mxu0 0.0
        %1361 = vmatmul.mubr.f32.gmra.mrb[0].mxu0 %v628
        %v1362 = vpop.f32.mrb[0].mxu0
        %v1363 = vadd.f32 0.0, %v1362
        %v1364 = vpop.f32.mrb[0].mxu0
        %v1365 = vadd.f32 0.0, %v1364
        %1366 = vmatprep.mubr.f32.mxu0 0.0
        %1367 = vmatmul.mubr.f32.gmra.mrb[0].mxu0 %v631
        %v1368 = vpop.f32.mrb[0].mxu0
        %v1369 = vadd.f32 0.0, %v1368
        %v1370 = vpop.f32.mrb[0].mxu0
        %v1371 = vadd.f32 0.0, %v1370
        %1372 = vdwg.mxu0
        %vm1373 = vcmask 64512
        %v1375 = vsel %vm1373, %v612, 0
        %v1378 = vsel %vm1373, %v613, 0
        %v1381 = vsel %vm1373, %v614, 0
        %v1384 = vsel %vm1373, %v615, 0
        %v1387 = vsel %vm1373, %v356, 0
        %v1390 = vsel %vm1373, %v357, 0
        %v1393 = vsel %vm1373, %v358, 0
        %v1396 = vsel %vm1373, %v359, 0
        %v1399 = vsel %vm1373, %v360, 0
        %v1402 = vsel %vm1373, %v361, 0
        %v1405 = vsel %vm1373, %v362, 0
        %v1408 = vsel %vm1373, %v363, 0
        %v1411 = vsel %vm1373, %v364, 0
        %v1414 = vsel %vm1373, %v365, 0
        %v1417 = vsel %vm1373, %v366, 0
        %v1420 = vsel %vm1373, %v367, 0
        %v1423 = vsel %vm1373, %v368, 0
        %v1426 = vsel %vm1373, %v369, 0
        %v1429 = vsel %vm1373, %v370, 0
        %v1432 = vsel %vm1373, %v371, 0
        %v1435 = vsel %vm1373, %v372, 0
        %v1438 = vsel %vm1373, %v373, 0
        %v1441 = vsel %vm1373, %v374, 0
        %v1444 = vsel %vm1373, %v375, 0
        %v1447 = vsel %vm1373, %v376, 0
        %v1450 = vsel %vm1373, %v377, 0
        %v1453 = vsel %vm1373, %v378, 0
        %v1456 = vsel %vm1373, %v379, 0
        %v1459 = vsel %vm1373, %v380, 0
        %v1462 = vsel %vm1373, %v381, 0
        %v1465 = vsel %vm1373, %v382, 0
        %v1468 = vsel %vm1373, %v383, 0
        %v1471 = vsel %vm1373, %v384, 0
        %v1474 = vsel %vm1373, %v385, 0
        %v1477 = vsel %vm1373, %v386, 0
        %v1480 = vsel %vm1373, %v387, 0
        %v1483 = vsel %vm1373, %v388, 0
        %v1486 = vsel %vm1373, %v389, 0
        %v1489 = vsel %vm1373, %v390, 0
        %v1492 = vsel %vm1373, %v391, 0
        %v1495 = vsel %vm1373, %v392, 0
        %v1498 = vsel %vm1373, %v393, 0
        %v1501 = vsel %vm1373, %v394, 0
        %v1504 = vsel %vm1373, %v395, 0
        %v1507 = vsel %vm1373, %v396, 0
        %v1510 = vsel %vm1373, %v397, 0
        %v1513 = vsel %vm1373, %v398, 0
        %v1516 = vsel %vm1373, %v399, 0
        %v1519 = vsel %vm1373, %v400, 0
        %v1522 = vsel %vm1373, %v401, 0
        %v1525 = vsel %vm1373, %v402, 0
        %v1528 = vsel %vm1373, %v403, 0
        %v1531 = vsel %vm1373, %v404, 0
        %v1534 = vsel %vm1373, %v405, 0
        %v1537 = vsel %vm1373, %v406, 0
        %v1540 = vsel %vm1373, %v407, 0
        %v1543 = vsel %vm1373, %v408, 0
        %v1546 = vsel %vm1373, %v409, 0
        %v1549 = vsel %vm1373, %v410, 0
        %v1552 = vsel %vm1373, %v411, 0
        %v1555 = vsel %vm1373, %v412, 0
        %v1558 = vsel %vm1373, %v413, 0
        %v1561 = vsel %vm1373, %v414, 0
        %v1564 = vsel %vm1373, %v415, 0
        %v1567 = vsel %vm1373, %v416, 0
        %v1570 = vsel %vm1373, %v417, 0
        %v1573 = vsel %vm1373, %v418, 0
        %v1576 = vsel %vm1373, %v419, 0
        %v1579 = vsel %vm1373, %v420, 0
        %v1582 = vsel %vm1373, %v421, 0
        %v1585 = vsel %vm1373, %v422, 0
        %v1588 = vsel %vm1373, %v423, 0
        %v1591 = vsel %vm1373, %v424, 0
        %v1594 = vsel %vm1373, %v425, 0
        %v1597 = vsel %vm1373, %v426, 0
        %v1600 = vsel %vm1373, %v427, 0
        %v1603 = vsel %vm1373, %v428, 0
        %v1606 = vsel %vm1373, %v429, 0
        %v1609 = vsel %vm1373, %v430, 0
        %v1612 = vsel %vm1373, %v431, 0
        %v1615 = vsel %vm1373, %v432, 0
        %v1618 = vsel %vm1373, %v433, 0
        %v1621 = vsel %vm1373, %v434, 0
        %v1624 = vsel %vm1373, %v435, 0
        %v1627 = vsel %vm1373, %v436, 0
        %v1630 = vsel %vm1373, %v437, 0
        %v1633 = vsel %vm1373, %v438, 0
        %v1636 = vsel %vm1373, %v439, 0
        %v1639 = vsel %vm1373, %v440, 0
        %v1642 = vsel %vm1373, %v441, 0
        %v1645 = vsel %vm1373, %v442, 0
        %v1648 = vsel %vm1373, %v443, 0
        %v1651 = vsel %vm1373, %v444, 0
        %v1654 = vsel %vm1373, %v445, 0
        %v1657 = vsel %vm1373, %v446, 0
        %v1660 = vsel %vm1373, %v447, 0
        %v1663 = vsel %vm1373, %v448, 0
        %v1666 = vsel %vm1373, %v449, 0
        %v1669 = vsel %vm1373, %v450, 0
        %v1672 = vsel %vm1373, %v451, 0
        %v1675 = vsel %vm1373, %v452, 0
        %v1678 = vsel %vm1373, %v453, 0
        %v1681 = vsel %vm1373, %v454, 0
        %v1684 = vsel %vm1373, %v455, 0
        %v1687 = vsel %vm1373, %v456, 0
        %v1690 = vsel %vm1373, %v457, 0
        %v1693 = vsel %vm1373, %v458, 0
        %v1696 = vsel %vm1373, %v459, 0
        %v1699 = vsel %vm1373, %v460, 0
        %v1702 = vsel %vm1373, %v461, 0
        %v1705 = vsel %vm1373, %v462, 0
        %v1708 = vsel %vm1373, %v463, 0
        %v1711 = vsel %vm1373, %v464, 0
        %v1714 = vsel %vm1373, %v465, 0
        %v1717 = vsel %vm1373, %v466, 0
        %v1720 = vsel %vm1373, %v467, 0
        %v1723 = vsel %vm1373, %v468, 0
        %v1726 = vsel %vm1373, %v469, 0
        %v1729 = vsel %vm1373, %v470, 0
        %v1732 = vsel %vm1373, %v471, 0
        %v1735 = vsel %vm1373, %v472, 0
        %v1738 = vsel %vm1373, %v473, 0
        %v1741 = vsel %vm1373, %v474, 0
        %v1744 = vsel %vm1373, %v475, 0
        %v1747 = vsel %vm1373, %v476, 0
        %v1750 = vsel %vm1373, %v477, 0
        %v1753 = vsel %vm1373, %v478, 0
        %v1756 = vsel %vm1373, %v479, 0
        %v1759 = vsel %vm1373, %v480, 0
        %v1762 = vsel %vm1373, %v481, 0
        %v1765 = vsel %vm1373, %v482, 0
        %v1768 = vsel %vm1373, %v483, 0
        %1770 = vmatprep.subr.mxu0 0.0
        %1771 = vmatpush1.xpose.msra.mxu0 %v1387
        %1772 = vmatprep.subr.mxu0 0.0
        %1773 = vmatpush1.xpose.msra.mxu0 %v1390
        %1774 = vmatprep.subr.mxu0 0.0
        %1775 = vmatpush1.xpose.msra.mxu0 %v1393
        %1776 = vmatprep.subr.mxu0 0.0
        %1777 = vmatpush1.xpose.msra.mxu0 %v1396
        %1778 = vmatprep.subr.mxu0 0.0
        %1779 = vmatpush1.xpose.msra.mxu0 %v1399
        %1780 = vmatprep.subr.mxu0 0.0
        %1781 = vmatpush1.xpose.msra.mxu0 %v1402
        %1782 = vmatprep.subr.mxu0 0.0
        %1783 = vmatpush1.xpose.msra.mxu0 %v1405
        %1784 = vmatprep.subr.mxu0 0.0
        %1785 = vmatpush1.xpose.msra.mxu0 %v1408
        %1786 = vmatprep.subr.mxu0 0.0
        %1787 = vmatpush1.xpose.msra.mxu0 %v1411
        %1788 = vmatprep.subr.mxu0 0.0
        %1789 = vmatpush1.xpose.msra.mxu0 %v1414
        %1790 = vmatprep.subr.mxu0 0.0
        %1791 = vmatpush1.xpose.msra.mxu0 %v1417
        %1792 = vmatprep.subr.mxu0 0.0
        %1793 = vmatpush1.xpose.msra.mxu0 %v1420
        %1794 = vmatprep.subr.mxu0 0.0
        %1795 = vmatpush1.xpose.msra.mxu0 %v1423
        %1796 = vmatprep.subr.mxu0 0.0
        %1797 = vmatpush1.xpose.msra.mxu0 %v1426
        %1798 = vmatprep.subr.mxu0 0.0
        %1799 = vmatpush1.xpose.msra.mxu0 %v1429
        %1800 = vmatprep.subr.mxu0 0.0
        %1801 = vmatpush1.xpose.msra.mxu0 %v1432
        %1802 = vmatprep.subr.mxu0 0.0
        %1803 = vmatpush1.xpose.msra.mxu0 %v1435
        %1804 = vmatprep.subr.mxu0 0.0
        %1805 = vmatpush1.xpose.msra.mxu0 %v1438
        %1806 = vmatprep.subr.mxu0 0.0
        %1807 = vmatpush1.xpose.msra.mxu0 %v1441
        %1808 = vmatprep.subr.mxu0 0.0
        %1809 = vmatpush1.xpose.msra.mxu0 %v1444
        %1810 = vmatprep.subr.mxu0 0.0
        %1811 = vmatpush1.xpose.msra.mxu0 %v1447
        %1812 = vmatprep.subr.mxu0 0.0
        %1813 = vmatpush1.xpose.msra.mxu0 %v1450
        %1814 = vmatprep.subr.mxu0 0.0
        %1815 = vmatpush1.xpose.msra.mxu0 %v1453
        %1816 = vmatprep.subr.mxu0 0.0
        %1817 = vmatpush1.xpose.msra.mxu0 %v1456
        %1818 = vmatprep.subr.mxu0 0.0
        %1819 = vmatpush1.xpose.msra.mxu0 %v1459
        %1820 = vmatprep.subr.mxu0 0.0
        %1821 = vmatpush1.xpose.msra.mxu0 %v1462
        %1822 = vmatprep.subr.mxu0 0.0
        %1823 = vmatpush1.xpose.msra.mxu0 %v1465
        %1824 = vmatprep.subr.mxu0 0.0
        %1825 = vmatpush1.xpose.msra.mxu0 %v1468
        %1826 = vmatprep.subr.mxu0 0.0
        %1827 = vmatpush1.xpose.msra.mxu0 %v1471
        %1828 = vmatprep.subr.mxu0 0.0
        %1829 = vmatpush1.xpose.msra.mxu0 %v1474
        %1830 = vmatprep.subr.mxu0 0.0
        %1831 = vmatpush1.xpose.msra.mxu0 %v1477
        %1832 = vmatprep.subr.mxu0 0.0
        %1833 = vmatpush1.xpose.msra.mxu0 %v1480
        %1834 = vmatprep.mubr.f32.mxu0 0.0
        %1835 = vmatmul.mubr.f32.gmra.mrb[0].mxu0 %v1375
        %v1836 = vpop.f32.mrb[0].mxu0
        %v1837 = vadd.f32 %v1084, %v1836
        %v1838 = vpop.f32.mrb[0].mxu0
        %v1839 = vadd.f32 %v1086, %v1838
        %1840 = vmatprep.mubr.f32.mxu0 0.0
        %1841 = vmatmul.mubr.f32.gmra.mrb[0].mxu0 %v1378
        %v1842 = vpop.f32.mrb[0].mxu0
        %v1843 = vadd.f32 %v1090, %v1842
        %v1844 = vpop.f32.mrb[0].mxu0
        %v1845 = vadd.f32 %v1092, %v1844
        %1846 = vmatprep.mubr.f32.mxu0 0.0
        %1847 = vmatmul.mubr.f32.gmra.mrb[0].mxu0 %v1381
        %v1848 = vpop.f32.mrb[0].mxu0
        %v1849 = vadd.f32 %v1096, %v1848
        %v1850 = vpop.f32.mrb[0].mxu0
        %v1851 = vadd.f32 %v1098, %v1850
        %1852 = vmatprep.mubr.f32.mxu0 0.0
        %1853 = vmatmul.mubr.f32.gmra.mrb[0].mxu0 %v1384
        %v1854 = vpop.f32.mrb[0].mxu0
        %v1855 = vadd.f32 %v1102, %v1854
        %v1856 = vpop.f32.mrb[0].mxu0
        %v1857 = vadd.f32 %v1104, %v1856
        %1858 = vdwg.mxu0
        %1859 = vmatprep.subr.mxu0 0.0
        %1860 = vmatpush1.xpose.msra.mxu0 %v1483
        %1861 = vmatprep.subr.mxu0 0.0
        %1862 = vmatpush1.xpose.msra.mxu0 %v1486
        %1863 = vmatprep.subr.mxu0 0.0
        %1864 = vmatpush1.xpose.msra.mxu0 %v1489
        %1865 = vmatprep.subr.mxu0 0.0
        %1866 = vmatpush1.xpose.msra.mxu0 %v1492
        %1867 = vmatprep.subr.mxu0 0.0
        %1868 = vmatpush1.xpose.msra.mxu0 %v1495
        %1869 = vmatprep.subr.mxu0 0.0
        %1870 = vmatpush1.xpose.msra.mxu0 %v1498
        %1871 = vmatprep.subr.mxu0 0.0
        %1872 = vmatpush1.xpose.msra.mxu0 %v1501
        %1873 = vmatprep.subr.mxu0 0.0
        %1874 = vmatpush1.xpose.msra.mxu0 %v1504
        %1875 = vmatprep.subr.mxu0 0.0
        %1876 = vmatpush1.xpose.msra.mxu0 %v1507
        %1877 = vmatprep.subr.mxu0 0.0
        %1878 = vmatpush1.xpose.msra.mxu0 %v1510
        %1879 = vmatprep.subr.mxu0 0.0
        %1880 = vmatpush1.xpose.msra.mxu0 %v1513
        %1881 = vmatprep.subr.mxu0 0.0
        %1882 = vmatpush1.xpose.msra.mxu0 %v1516
        %1883 = vmatprep.subr.mxu0 0.0
        %1884 = vmatpush1.xpose.msra.mxu0 %v1519
        %1885 = vmatprep.subr.mxu0 0.0
        %1886 = vmatpush1.xpose.msra.mxu0 %v1522
        %1887 = vmatprep.subr.mxu0 0.0
        %1888 = vmatpush1.xpose.msra.mxu0 %v1525
        %1889 = vmatprep.subr.mxu0 0.0
        %1890 = vmatpush1.xpose.msra.mxu0 %v1528
        %1891 = vmatprep.subr.mxu0 0.0
        %1892 = vmatpush1.xpose.msra.mxu0 %v1531
        %1893 = vmatprep.subr.mxu0 0.0
        %1894 = vmatpush1.xpose.msra.mxu0 %v1534
        %1895 = vmatprep.subr.mxu0 0.0
        %1896 = vmatpush1.xpose.msra.mxu0 %v1537
        %1897 = vmatprep.subr.mxu0 0.0
        %1898 = vmatpush1.xpose.msra.mxu0 %v1540
        %1899 = vmatprep.subr.mxu0 0.0
        %1900 = vmatpush1.xpose.msra.mxu0 %v1543
        %1901 = vmatprep.subr.mxu0 0.0
        %1902 = vmatpush1.xpose.msra.mxu0 %v1546
        %1903 = vmatprep.subr.mxu0 0.0
        %1904 = vmatpush1.xpose.msra.mxu0 %v1549
        %1905 = vmatprep.subr.mxu0 0.0
        %1906 = vmatpush1.xpose.msra.mxu0 %v1552
        %1907 = vmatprep.subr.mxu0 0.0
        %1908 = vmatpush1.xpose.msra.mxu0 %v1555
        %1909 = vmatprep.subr.mxu0 0.0
        %1910 = vmatpush1.xpose.msra.mxu0 %v1558
        %1911 = vmatprep.subr.mxu0 0.0
        %1912 = vmatpush1.xpose.msra.mxu0 %v1561
        %1913 = vmatprep.subr.mxu0 0.0
        %1914 = vmatpush1.xpose.msra.mxu0 %v1564
        %1915 = vmatprep.subr.mxu0 0.0
        %1916 = vmatpush1.xpose.msra.mxu0 %v1567
        %1917 = vmatprep.subr.mxu0 0.0
        %1918 = vmatpush1.xpose.msra.mxu0 %v1570
        %1919 = vmatprep.subr.mxu0 0.0
        %1920 = vmatpush1.xpose.msra.mxu0 %v1573
        %1921 = vmatprep.subr.mxu0 0.0
        %1922 = vmatpush1.xpose.msra.mxu0 %v1576
        %1923 = vmatprep.mubr.f32.mxu0 0.0
        %1924 = vmatmul.mubr.f32.gmra.mrb[0].mxu0 %v1375
        %v1925 = vpop.f32.mrb[0].mxu0
        %v1926 = vadd.f32 %v1173, %v1925
        %v1927 = vpop.f32.mrb[0].mxu0
        %v1928 = vadd.f32 %v1175, %v1927
        %1929 = vmatprep.mubr.f32.mxu0 0.0
        %1930 = vmatmul.mubr.f32.gmra.mrb[0].mxu0 %v1378
        %v1931 = vpop.f32.mrb[0].mxu0
        %v1932 = vadd.f32 %v1179, %v1931
        %v1933 = vpop.f32.mrb[0].mxu0
        %v1934 = vadd.f32 %v1181, %v1933
        %1935 = vmatprep.mubr.f32.mxu0 0.0
        %1936 = vmatmul.mubr.f32.gmra.mrb[0].mxu0 %v1381
        %v1937 = vpop.f32.mrb[0].mxu0
        %v1938 = vadd.f32 %v1185, %v1937
        %v1939 = vpop.f32.mrb[0].mxu0
        %v1940 = vadd.f32 %v1187, %v1939
        %1941 = vmatprep.mubr.f32.mxu0 0.0
        %1942 = vmatmul.mubr.f32.gmra.mrb[0].mxu0 %v1384
        %v1943 = vpop.f32.mrb[0].mxu0
        %v1944 = vadd.f32 %v1191, %v1943
        %v1945 = vpop.f32.mrb[0].mxu0
        %v1946 = vadd.f32 %v1193, %v1945
        %1947 = vdwg.mxu0
        %1948 = vmatprep.subr.mxu0 0.0
        %1949 = vmatpush1.xpose.msra.mxu0 %v1579
        %1950 = vmatprep.subr.mxu0 0.0
        %1951 = vmatpush1.xpose.msra.mxu0 %v1582
        %1952 = vmatprep.subr.mxu0 0.0
        %1953 = vmatpush1.xpose.msra.mxu0 %v1585
        %1954 = vmatprep.subr.mxu0 0.0
        %1955 = vmatpush1.xpose.msra.mxu0 %v1588
        %1956 = vmatprep.subr.mxu0 0.0
        %1957 = vmatpush1.xpose.msra.mxu0 %v1591
        %1958 = vmatprep.subr.mxu0 0.0
        %1959 = vmatpush1.xpose.msra.mxu0 %v1594
        %1960 = vmatprep.subr.mxu0 0.0
        %1961 = vmatpush1.xpose.msra.mxu0 %v1597
        %1962 = vmatprep.subr.mxu0 0.0
        %1963 = vmatpush1.xpose.msra.mxu0 %v1600
        %1964 = vmatprep.subr.mxu0 0.0
        %1965 = vmatpush1.xpose.msra.mxu0 %v1603
        %1966 = vmatprep.subr.mxu0 0.0
        %1967 = vmatpush1.xpose.msra.mxu0 %v1606
        %1968 = vmatprep.subr.mxu0 0.0
        %1969 = vmatpush1.xpose.msra.mxu0 %v1609
        %1970 = vmatprep.subr.mxu0 0.0
        %1971 = vmatpush1.xpose.msra.mxu0 %v1612
        %1972 = vmatprep.subr.mxu0 0.0
        %1973 = vmatpush1.xpose.msra.mxu0 %v1615
        %1974 = vmatprep.subr.mxu0 0.0
        %1975 = vmatpush1.xpose.msra.mxu0 %v1618
        %1976 = vmatprep.subr.mxu0 0.0
        %1977 = vmatpush1.xpose.msra.mxu0 %v1621
        %1978 = vmatprep.subr.mxu0 0.0
        %1979 = vmatpush1.xpose.msra.mxu0 %v1624
        %1980 = vmatprep.subr.mxu0 0.0
        %1981 = vmatpush1.xpose.msra.mxu0 %v1627
        %1982 = vmatprep.subr.mxu0 0.0
        %1983 = vmatpush1.xpose.msra.mxu0 %v1630
        %1984 = vmatprep.subr.mxu0 0.0
        %1985 = vmatpush1.xpose.msra.mxu0 %v1633
        %1986 = vmatprep.subr.mxu0 0.0
        %1987 = vmatpush1.xpose.msra.mxu0 %v1636
        %1988 = vmatprep.subr.mxu0 0.0
        %1989 = vmatpush1.xpose.msra.mxu0 %v1639
        %1990 = vmatprep.subr.mxu0 0.0
        %1991 = vmatpush1.xpose.msra.mxu0 %v1642
        %1992 = vmatprep.subr.mxu0 0.0
        %1993 = vmatpush1.xpose.msra.mxu0 %v1645
        %1994 = vmatprep.subr.mxu0 0.0
        %1995 = vmatpush1.xpose.msra.mxu0 %v1648
        %1996 = vmatprep.subr.mxu0 0.0
        %1997 = vmatpush1.xpose.msra.mxu0 %v1651
        %1998 = vmatprep.subr.mxu0 0.0
        %1999 = vmatpush1.xpose.msra.mxu0 %v1654
        %2000 = vmatprep.subr.mxu0 0.0
        %2001 = vmatpush1.xpose.msra.mxu0 %v1657
        %2002 = vmatprep.subr.mxu0 0.0
        %2003 = vmatpush1.xpose.msra.mxu0 %v1660
        %2004 = vmatprep.subr.mxu0 0.0
        %2005 = vmatpush1.xpose.msra.mxu0 %v1663
        %2006 = vmatprep.subr.mxu0 0.0
        %2007 = vmatpush1.xpose.msra.mxu0 %v1666
        %2008 = vmatprep.subr.mxu0 0.0
        %2009 = vmatpush1.xpose.msra.mxu0 %v1669
        %2010 = vmatprep.subr.mxu0 0.0
        %2011 = vmatpush1.xpose.msra.mxu0 %v1672
        %2012 = vmatprep.mubr.f32.mxu0 0.0
        %2013 = vmatmul.mubr.f32.gmra.mrb[0].mxu0 %v1375
        %v2014 = vpop.f32.mrb[0].mxu0
        %v2015 = vadd.f32 %v1262, %v2014
        %v2016 = vpop.f32.mrb[0].mxu0
        %v2017 = vadd.f32 %v1264, %v2016
        %2018 = vmatprep.mubr.f32.mxu0 0.0
        %2019 = vmatmul.mubr.f32.gmra.mrb[0].mxu0 %v1378
        %v2020 = vpop.f32.mrb[0].mxu0
        %v2021 = vadd.f32 %v1268, %v2020
        %v2022 = vpop.f32.mrb[0].mxu0
        %v2023 = vadd.f32 %v1270, %v2022
        %2024 = vmatprep.mubr.f32.mxu0 0.0
        %2025 = vmatmul.mubr.f32.gmra.mrb[0].mxu0 %v1381
        %v2026 = vpop.f32.mrb[0].mxu0
        %v2027 = vadd.f32 %v1274, %v2026
        %v2028 = vpop.f32.mrb[0].mxu0
        %v2029 = vadd.f32 %v1276, %v2028
        %2030 = vmatprep.mubr.f32.mxu0 0.0
        %2031 = vmatmul.mubr.f32.gmra.mrb[0].mxu0 %v1384
        %v2032 = vpop.f32.mrb[0].mxu0
        %v2033 = vadd.f32 %v1280, %v2032
        %v2034 = vpop.f32.mrb[0].mxu0
        %v2035 = vadd.f32 %v1282, %v2034
        %2036 = vdwg.mxu0
        %2037 = vmatprep.subr.mxu0 0.0
        %2038 = vmatpush1.xpose.msra.mxu0 %v1675
        %2039 = vmatprep.subr.mxu0 0.0
        %2040 = vmatpush1.xpose.msra.mxu0 %v1678
        %2041 = vmatprep.subr.mxu0 0.0
        %2042 = vmatpush1.xpose.msra.mxu0 %v1681
        %2043 = vmatprep.subr.mxu0 0.0
        %2044 = vmatpush1.xpose.msra.mxu0 %v1684
        %2045 = vmatprep.subr.mxu0 0.0
        %2046 = vmatpush1.xpose.msra.mxu0 %v1687
        %2047 = vmatprep.subr.mxu0 0.0
        %2048 = vmatpush1.xpose.msra.mxu0 %v1690
        %2049 = vmatprep.subr.mxu0 0.0
        %2050 = vmatpush1.xpose.msra.mxu0 %v1693
        %2051 = vmatprep.subr.mxu0 0.0
        %2052 = vmatpush1.xpose.msra.mxu0 %v1696
        %2053 = vmatprep.subr.mxu0 0.0
        %2054 = vmatpush1.xpose.msra.mxu0 %v1699
        %2055 = vmatprep.subr.mxu0 0.0
        %2056 = vmatpush1.xpose.msra.mxu0 %v1702
        %2057 = vmatprep.subr.mxu0 0.0
        %2058 = vmatpush1.xpose.msra.mxu0 %v1705
        %2059 = vmatprep.subr.mxu0 0.0
        %2060 = vmatpush1.xpose.msra.mxu0 %v1708
        %2061 = vmatprep.subr.mxu0 0.0
        %2062 = vmatpush1.xpose.msra.mxu0 %v1711
        %2063 = vmatprep.subr.mxu0 0.0
        %2064 = vmatpush1.xpose.msra.mxu0 %v1714
        %2065 = vmatprep.subr.mxu0 0.0
        %2066 = vmatpush1.xpose.msra.mxu0 %v1717
        %2067 = vmatprep.subr.mxu0 0.0
        %2068 = vmatpush1.xpose.msra.mxu0 %v1720
        %2069 = vmatprep.subr.mxu0 0.0
        %2070 = vmatpush1.xpose.msra.mxu0 %v1723
        %2071 = vmatprep.subr.mxu0 0.0
        %2072 = vmatpush1.xpose.msra.mxu0 %v1726
        %2073 = vmatprep.subr.mxu0 0.0
        %2074 = vmatpush1.xpose.msra.mxu0 %v1729
        %2075 = vmatprep.subr.mxu0 0.0
        %2076 = vmatpush1.xpose.msra.mxu0 %v1732
        %2077 = vmatprep.subr.mxu0 0.0
        %2078 = vmatpush1.xpose.msra.mxu0 %v1735
        %2079 = vmatprep.subr.mxu0 0.0
        %2080 = vmatpush1.xpose.msra.mxu0 %v1738
        %2081 = vmatprep.subr.mxu0 0.0
        %2082 = vmatpush1.xpose.msra.mxu0 %v1741
        %2083 = vmatprep.subr.mxu0 0.0
        %2084 = vmatpush1.xpose.msra.mxu0 %v1744
        %2085 = vmatprep.subr.mxu0 0.0
        %2086 = vmatpush1.xpose.msra.mxu0 %v1747
        %2087 = vmatprep.subr.mxu0 0.0
        %2088 = vmatpush1.xpose.msra.mxu0 %v1750
        %2089 = vmatprep.subr.mxu0 0.0
        %2090 = vmatpush1.xpose.msra.mxu0 %v1753
        %2091 = vmatprep.subr.mxu0 0.0
        %2092 = vmatpush1.xpose.msra.mxu0 %v1756
        %2093 = vmatprep.subr.mxu0 0.0
        %2094 = vmatpush1.xpose.msra.mxu0 %v1759
        %2095 = vmatprep.subr.mxu0 0.0
        %2096 = vmatpush1.xpose.msra.mxu0 %v1762
        %2097 = vmatprep.subr.mxu0 0.0
        %2098 = vmatpush1.xpose.msra.mxu0 %v1765
        %2099 = vmatprep.subr.mxu0 0.0
        %2100 = vmatpush1.xpose.msra.mxu0 %v1768
        %2101 = vmatprep.mubr.f32.mxu0 0.0
        %2102 = vmatmul.mubr.f32.gmra.mrb[0].mxu0 %v1375
        %v2103 = vpop.f32.mrb[0].mxu0
        %v2104 = vadd.f32 %v1351, %v2103
        %v2105 = vpop.f32.mrb[0].mxu0
        %v2106 = vadd.f32 %v1353, %v2105
        %2107 = vmatprep.mubr.f32.mxu0 0.0
        %2108 = vmatmul.mubr.f32.gmra.mrb[0].mxu0 %v1378
        %v2109 = vpop.f32.mrb[0].mxu0
        %v2110 = vadd.f32 %v1357, %v2109
        %v2111 = vpop.f32.mrb[0].mxu0
        %v2112 = vadd.f32 %v1359, %v2111
        %2113 = vmatprep.mubr.f32.mxu0 0.0
        %2114 = vmatmul.mubr.f32.gmra.mrb[0].mxu0 %v1381
        %v2115 = vpop.f32.mrb[0].mxu0
        %v2116 = vadd.f32 %v1363, %v2115
        %v2117 = vpop.f32.mrb[0].mxu0
        %v2118 = vadd.f32 %v1365, %v2117
        %2119 = vmatprep.mubr.f32.mxu0 0.0
        %2120 = vmatmul.mubr.f32.gmra.mrb[0].mxu0 %v1384
        %v2121 = vpop.f32.mrb[0].mxu0
        %v2122 = vadd.f32 %v1369, %v2121
        %v2123 = vpop.f32.mrb[0].mxu0
        %v2124 = vadd.f32 %v1371, %v2123
        %2125 = vdwg.mxu0
        %v2126 = vld [vmem:[%s4] sm:$0xff]
        %v2127 = vld [vmem:[%s4 + $0x8] sm:$0xff]
        %v2128 = vld [vmem:[%s4 + $0x10] sm:$0xff]
        %v2129 = vld [vmem:[%s4 + $0x18] sm:$0xff]
        %2131 = vset.pattern.permute.xlu0 0
        %2132 = vperm.xlu0 %2131, %v2126
        %v2133 = vpop.permute.xlu0 %2132
        %2136 = vset.pattern.permute.xlu0 0
        %2137 = vperm.xlu0 %2136, %v2127
        %v2138 = vpop.permute.xlu0 %2137
        %2141 = vset.pattern.permute.xlu0 0
        %2142 = vperm.xlu0 %2141, %v2128
        %v2143 = vpop.permute.xlu0 %2142
        %2146 = vset.pattern.permute.xlu0 0
        %2147 = vperm.xlu0 %2146, %v2129
        %v2148 = vpop.permute.xlu0 %2147
        %v2150 = vadd.f32 %v1837, %v2133
        %v2151 = vadd.f32 %v1839, %v2133
        %v2152 = vadd.f32 %v1926, %v2133
        %v2153 = vadd.f32 %v1928, %v2133
        %v2154 = vadd.f32 %v2015, %v2133
        %v2155 = vadd.f32 %v2017, %v2133
        %v2156 = vadd.f32 %v2104, %v2133
        %v2157 = vadd.f32 %v2106, %v2133
        %v2158 = vadd.f32 %v1843, %v2138
        %v2159 = vadd.f32 %v1845, %v2138
        %v2160 = vadd.f32 %v1932, %v2138
        %v2161 = vadd.f32 %v1934, %v2138
        %v2162 = vadd.f32 %v2021, %v2138
        %v2163 = vadd.f32 %v2023, %v2138
        %v2164 = vadd.f32 %v2110, %v2138
        %v2165 = vadd.f32 %v2112, %v2138
        %v2166 = vadd.f32 %v1849, %v2143
        %v2167 = vadd.f32 %v1851, %v2143
        %v2168 = vadd.f32 %v1938, %v2143
        %v2169 = vadd.f32 %v1940, %v2143
        %v2170 = vadd.f32 %v2027, %v2143
        %v2171 = vadd.f32 %v2029, %v2143
        %v2172 = vadd.f32 %v2116, %v2143
        %v2173 = vadd.f32 %v2118, %v2143
        %v2174 = vadd.f32 %v1855, %v2148
        %v2175 = vadd.f32 %v1857, %v2148
        %v2176 = vadd.f32 %v1944, %v2148
        %v2177 = vadd.f32 %v1946, %v2148
        %v2178 = vadd.f32 %v2033, %v2148
        %v2179 = vadd.f32 %v2035, %v2148
        %v2180 = vadd.f32 %v2122, %v2148
        %v2181 = vadd.f32 %v2124, %v2148
        %v2182 = vmax.f32 %v2150, 0.0
        %v2183 = vmax.f32 %v2151, 0.0
        %v2184 = vmax.f32 %v2152, 0.0
        %v2185 = vmax.f32 %v2153, 0.0
        %v2186 = vmax.f32 %v2154, 0.0
        %v2187 = vmax.f32 %v2155, 0.0
        %v2188 = vmax.f32 %v2156, 0.0
        %v2189 = vmax.f32 %v2157, 0.0
        %v2190 = vmax.f32 %v2158, 0.0
        %v2191 = vmax.f32 %v2159, 0.0
        %v2192 = vmax.f32 %v2160, 0.0
        %v2193 = vmax.f32 %v2161, 0.0
        %v2194 = vmax.f32 %v2162, 0.0
        %v2195 = vmax.f32 %v2163, 0.0
        %v2196 = vmax.f32 %v2164, 0.0
        %v2197 = vmax.f32 %v2165, 0.0
        %v2198 = vmax.f32 %v2166, 0.0
        %v2199 = vmax.f32 %v2167, 0.0
        %v2200 = vmax.f32 %v2168, 0.0
        %v2201 = vmax.f32 %v2169, 0.0
        %v2202 = vmax.f32 %v2170, 0.0
        %v2203 = vmax.f32 %v2171, 0.0
        %v2204 = vmax.f32 %v2172, 0.0
        %v2205 = vmax.f32 %v2173, 0.0
        %v2206 = vmax.f32 %v2174, 0.0
        %v2207 = vmax.f32 %v2175, 0.0
        %v2208 = vmax.f32 %v2176, 0.0
        %v2209 = vmax.f32 %v2177, 0.0
        %v2210 = vmax.f32 %v2178, 0.0
        %v2211 = vmax.f32 %v2179, 0.0
        %v2212 = vmax.f32 %v2180, 0.0
        %v2213 = vmax.f32 %v2181, 0.0
        %v2214 = vld [vmem:[%s5] sm:$0xff]
        %v2215 = vld [vmem:[%s5 + $0x8] sm:$0xff]
        %v2216 = vld [vmem:[%s6] sm:$0xff]
        %v2217 = vld [vmem:[%s6 + $0x8] sm:$0xff]
        %2219 = vset.pattern.permute.xlu0 0
        %2220 = vperm.xlu0 %2219, %v2216
        %v2221 = vpop.permute.xlu0 %2220
        %2224 = vset.pattern.permute.xlu0 0
        %2225 = vperm.xlu0 %2224, %v2217
        %v2226 = vpop.permute.xlu0 %2225
        %vm2228 = vcmask 261120
        %v2230 = vsel %vm2228, %v2214, 0
        %v2233 = vsel %vm2228, %v2215, 0
        %2235 = vmatprep.subr.mxu0 %v2183
        %2236 = vmatpush1.msra.mxu0 %v2182
        %2237 = vmatprep.subr.mxu0 %v2191
        %2238 = vmatpush1.msra.mxu0 %v2190
        %2239 = vmatprep.subr.mxu0 %v2199
        %2240 = vmatpush1.msra.mxu0 %v2198
        %2241 = vmatprep.subr.mxu0 %v2207
        %2242 = vmatpush1.msra.mxu0 %v2206
        %2243 = vmatprep.subr.mxu0 0.0
        %2244 = vmatpush1.msra.mxu0 0.0
        %2245 = vmatprep.subr.mxu0 0.0
        %2246 = vmatpush1.msra.mxu0 0.0
        %2247 = vmatprep.subr.mxu0 0.0
        %2248 = vmatpush1.msra.mxu0 0.0
        %2249 = vmatprep.subr.mxu0 0.0
        %2250 = vmatpush1.msra.mxu0 0.0
        %2251 = vmatprep.subr.mxu0 0.0
        %2252 = vmatpush1.msra.mxu0 0.0
        %2253 = vmatprep.subr.mxu0 0.0
        %2254 = vmatpush1.msra.mxu0 0.0
        %2255 = vmatprep.subr.mxu0 0.0
        %2256 = vmatpush1.msra.mxu0 0.0
        %2257 = vmatprep.subr.mxu0 0.0
        %2258 = vmatpush1.msra.mxu0 0.0
        %2259 = vmatprep.subr.mxu0 0.0
        %2260 = vmatpush1.msra.mxu0 0.0
        %2261 = vmatprep.subr.mxu0 0.0
        %2262 = vmatpush1.msra.mxu0 0.0
        %2263 = vmatprep.subr.mxu0 0.0
        %2264 = vmatpush1.msra.mxu0 0.0
        %2265 = vmatprep.subr.mxu0 0.0
        %2266 = vmatpush1.msra.mxu0 0.0
        %2267 = vmatprep.subr.mxu0 0.0
        %2268 = vmatpush1.msra.mxu0 0.0
        %2269 = vmatprep.subr.mxu0 0.0
        %2270 = vmatpush1.msra.mxu0 0.0
        %2271 = vmatprep.subr.mxu0 0.0
        %2272 = vmatpush1.msra.mxu0 0.0
        %2273 = vmatprep.subr.mxu0 0.0
        %2274 = vmatpush1.msra.mxu0 0.0
        %2275 = vmatprep.subr.mxu0 0.0
        %2276 = vmatpush1.msra.mxu0 0.0
        %2277 = vmatprep.subr.mxu0 0.0
        %2278 = vmatpush1.msra.mxu0 0.0
        %2279 = vmatprep.subr.mxu0 0.0
        %2280 = vmatpush1.msra.mxu0 0.0
        %2281 = vmatprep.subr.mxu0 0.0
        %2282 = vmatpush1.msra.mxu0 0.0
        %2283 = vmatprep.subr.mxu0 0.0
        %2284 = vmatpush1.msra.mxu0 0.0
        %2285 = vmatprep.subr.mxu0 0.0
        %2286 = vmatpush1.msra.mxu0 0.0
        %2287 = vmatprep.subr.mxu0 0.0
        %2288 = vmatpush1.msra.mxu0 0.0
        %2289 = vmatprep.subr.mxu0 0.0
        %2290 = vmatpush1.msra.mxu0 0.0
        %2291 = vmatprep.subr.mxu0 0.0
        %2292 = vmatpush1.msra.mxu0 0.0
        %2293 = vmatprep.subr.mxu0 0.0
        %2294 = vmatpush1.msra.mxu0 0.0
        %2295 = vmatprep.subr.mxu0 0.0
        %2296 = vmatpush1.msra.mxu0 0.0
        %2297 = vmatprep.subr.mxu0 0.0
        %2298 = vmatpush1.msra.mxu0 0.0
        %2299 = vmatprep.mubr.f32.mxu0 0.0
        %2300 = vmatmul.mubr.f32.gmra.mrb[0].mxu0 %v2230
        %v2301 = vpop.f32.mrb[0].mxu0
        %v2302 = vadd.f32 %v2221, %v2301
        %v2303 = vpop.f32.mrb[0].mxu0
        %v2304 = vadd.f32 %v2221, %v2303
        %2305 = vmatprep.mubr.f32.mxu0 0.0
        %2306 = vmatmul.mubr.f32.gmra.mrb[0].mxu0 %v2233
        %v2307 = vpop.f32.mrb[0].mxu0
        %v2308 = vadd.f32 %v2226, %v2307
        %v2309 = vpop.f32.mrb[0].mxu0
        %v2310 = vadd.f32 %v2226, %v2309
        %2311 = vdwg.mxu0
        %2312 = vmatprep.subr.mxu0 %v2185
        %2313 = vmatpush1.msra.mxu0 %v2184
        %2314 = vmatprep.subr.mxu0 %v2193
        %2315 = vmatpush1.msra.mxu0 %v2192
        %2316 = vmatprep.subr.mxu0 %v2201
        %2317 = vmatpush1.msra.mxu0 %v2200
        %2318 = vmatprep.subr.mxu0 %v2209
        %2319 = vmatpush1.msra.mxu0 %v2208
        %2320 = vmatprep.subr.mxu0 0.0
        %2321 = vmatpush1.msra.mxu0 0.0
        %2322 = vmatprep.subr.mxu0 0.0
        %2323 = vmatpush1.msra.mxu0 0.0
        %2324 = vmatprep.subr.mxu0 0.0
        %2325 = vmatpush1.msra.mxu0 0.0
        %2326 = vmatprep.subr.mxu0 0.0
        %2327 = vmatpush1.msra.mxu0 0.0
        %2328 = vmatprep.subr.mxu0 0.0
        %2329 = vmatpush1.msra.mxu0 0.0
        %2330 = vmatprep.subr.mxu0 0.0
        %2331 = vmatpush1.msra.mxu0 0.0
        %2332 = vmatprep.subr.mxu0 0.0
        %2333 = vmatpush1.msra.mxu0 0.0
        %2334 = vmatprep.subr.mxu0 0.0
        %2335 = vmatpush1.msra.mxu0 0.0
        %2336 = vmatprep.subr.mxu0 0.0
        %2337 = vmatpush1.msra.mxu0 0.0
        %2338 = vmatprep.subr.mxu0 0.0
        %2339 = vmatpush1.msra.mxu0 0.0
        %2340 = vmatprep.subr.mxu0 0.0
        %2341 = vmatpush1.msra.mxu0 0.0
        %2342 = vmatprep.subr.mxu0 0.0
        %2343 = vmatpush1.msra.mxu0 0.0
        %2344 = vmatprep.subr.mxu0 0.0
        %2345 = vmatpush1.msra.mxu0 0.0
        %2346 = vmatprep.subr.mxu0 0.0
        %2347 = vmatpush1.msra.mxu0 0.0
        %2348 = vmatprep.subr.mxu0 0.0
        %2349 = vmatpush1.msra.mxu0 0.0
        %2350 = vmatprep.subr.mxu0 0.0
        %2351 = vmatpush1.msra.mxu0 0.0
        %2352 = vmatprep.subr.mxu0 0.0
        %2353 = vmatpush1.msra.mxu0 0.0
        %2354 = vmatprep.subr.mxu0 0.0
        %2355 = vmatpush1.msra.mxu0 0.0
        %2356 = vmatprep.subr.mxu0 0.0
        %2357 = vmatpush1.msra.mxu0 0.0
        %2358 = vmatprep.subr.mxu0 0.0
        %2359 = vmatpush1.msra.mxu0 0.0
        %2360 = vmatprep.subr.mxu0 0.0
        %2361 = vmatpush1.msra.mxu0 0.0
        %2362 = vmatprep.subr.mxu0 0.0
        %2363 = vmatpush1.msra.mxu0 0.0
        %2364 = vmatprep.subr.mxu0 0.0
        %2365 = vmatpush1.msra.mxu0 0.0
        %2366 = vmatprep.subr.mxu0 0.0
        %2367 = vmatpush1.msra.mxu0 0.0
        %2368 = vmatprep.subr.mxu0 0.0
        %2369 = vmatpush1.msra.mxu0 0.0
        %2370 = vmatprep.subr.mxu0 0.0
        %2371 = vmatpush1.msra.mxu0 0.0
        %2372 = vmatprep.subr.mxu0 0.0
        %2373 = vmatpush1.msra.mxu0 0.0
        %2374 = vmatprep.subr.mxu0 0.0
        %2375 = vmatpush1.msra.mxu0 0.0
        %2376 = vmatprep.mubr.f32.mxu0 0.0
        %2377 = vmatmul.mubr.f32.gmra.mrb[0].mxu0 %v2230
        %v2378 = vpop.f32.mrb[0].mxu0
        %v2379 = vadd.f32 %v2221, %v2378
        %v2380 = vpop.f32.mrb[0].mxu0
        %v2381 = vadd.f32 %v2221, %v2380
        %2382 = vmatprep.mubr.f32.mxu0 0.0
        %2383 = vmatmul.mubr.f32.gmra.mrb[0].mxu0 %v2233
        %v2384 = vpop.f32.mrb[0].mxu0
        %v2385 = vadd.f32 %v2226, %v2384
        %v2386 = vpop.f32.mrb[0].mxu0
        %v2387 = vadd.f32 %v2226, %v2386
        %2388 = vdwg.mxu0
        %2389 = vmatprep.subr.mxu0 %v2187
        %2390 = vmatpush1.msra.mxu0 %v2186
        %2391 = vmatprep.subr.mxu0 %v2195
        %2392 = vmatpush1.msra.mxu0 %v2194
        %2393 = vmatprep.subr.mxu0 %v2203
        %2394 = vmatpush1.msra.mxu0 %v2202
        %2395 = vmatprep.subr.mxu0 %v2211
        %2396 = vmatpush1.msra.mxu0 %v2210
        %2397 = vmatprep.subr.mxu0 0.0
        %2398 = vmatpush1.msra.mxu0 0.0
        %2399 = vmatprep.subr.mxu0 0.0
        %2400 = vmatpush1.msra.mxu0 0.0
        %2401 = vmatprep.subr.mxu0 0.0
        %2402 = vmatpush1.msra.mxu0 0.0
        %2403 = vmatprep.subr.mxu0 0.0
        %2404 = vmatpush1.msra.mxu0 0.0
        %2405 = vmatprep.subr.mxu0 0.0
        %2406 = vmatpush1.msra.mxu0 0.0
        %2407 = vmatprep.subr.mxu0 0.0
        %2408 = vmatpush1.msra.mxu0 0.0
        %2409 = vmatprep.subr.mxu0 0.0
        %2410 = vmatpush1.msra.mxu0 0.0
        %2411 = vmatprep.subr.mxu0 0.0
        %2412 = vmatpush1.msra.mxu0 0.0
        %2413 = vmatprep.subr.mxu0 0.0
        %2414 = vmatpush1.msra.mxu0 0.0
        %2415 = vmatprep.subr.mxu0 0.0
        %2416 = vmatpush1.msra.mxu0 0.0
        %2417 = vmatprep.subr.mxu0 0.0
        %2418 = vmatpush1.msra.mxu0 0.0
        %2419 = vmatprep.subr.mxu0 0.0
        %2420 = vmatpush1.msra.mxu0 0.0
        %2421 = vmatprep.subr.mxu0 0.0
        %2422 = vmatpush1.msra.mxu0 0.0
        %2423 = vmatprep.subr.mxu0 0.0
        %2424 = vmatpush1.msra.mxu0 0.0
        %2425 = vmatprep.subr.mxu0 0.0
        %2426 = vmatpush1.msra.mxu0 0.0
        %2427 = vmatprep.subr.mxu0 0.0
        %2428 = vmatpush1.msra.mxu0 0.0
        %2429 = vmatprep.subr.mxu0 0.0
        %2430 = vmatpush1.msra.mxu0 0.0
        %2431 = vmatprep.subr.mxu0 0.0
        %2432 = vmatpush1.msra.mxu0 0.0
        %2433 = vmatprep.subr.mxu0 0.0
        %2434 = vmatpush1.msra.mxu0 0.0
        %2435 = vmatprep.subr.mxu0 0.0
        %2436 = vmatpush1.msra.mxu0 0.0
        %2437 = vmatprep.subr.mxu0 0.0
        %2438 = vmatpush1.msra.mxu0 0.0
        %2439 = vmatprep.subr.mxu0 0.0
        %2440 = vmatpush1.msra.mxu0 0.0
        %2441 = vmatprep.subr.mxu0 0.0
        %2442 = vmatpush1.msra.mxu0 0.0
        %2443 = vmatprep.subr.mxu0 0.0
        %2444 = vmatpush1.msra.mxu0 0.0
        %2445 = vmatprep.subr.mxu0 0.0
        %2446 = vmatpush1.msra.mxu0 0.0
        %2447 = vmatprep.subr.mxu0 0.0
        %2448 = vmatpush1.msra.mxu0 0.0
        %2449 = vmatprep.subr.mxu0 0.0
        %2450 = vmatpush1.msra.mxu0 0.0
        %2451 = vmatprep.subr.mxu0 0.0
        %2452 = vmatpush1.msra.mxu0 0.0
        %2453 = vmatprep.mubr.f32.mxu0 0.0
        %2454 = vmatmul.mubr.f32.gmra.mrb[0].mxu0 %v2230
        %v2455 = vpop.f32.mrb[0].mxu0
        %v2456 = vadd.f32 %v2221, %v2455
        %v2457 = vpop.f32.mrb[0].mxu0
        %v2458 = vadd.f32 %v2221, %v2457
        %2459 = vmatprep.mubr.f32.mxu0 0.0
        %2460 = vmatmul.mubr.f32.gmra.mrb[0].mxu0 %v2233
        %v2461 = vpop.f32.mrb[0].mxu0
        %v2462 = vadd.f32 %v2226, %v2461
        %v2463 = vpop.f32.mrb[0].mxu0
        %v2464 = vadd.f32 %v2226, %v2463
        %2465 = vdwg.mxu0
        %2466 = vmatprep.subr.mxu0 %v2189
        %2467 = vmatpush1.msra.mxu0 %v2188
        %2468 = vmatprep.subr.mxu0 %v2197
        %2469 = vmatpush1.msra.mxu0 %v2196
        %2470 = vmatprep.subr.mxu0 %v2205
        %2471 = vmatpush1.msra.mxu0 %v2204
        %2472 = vmatprep.subr.mxu0 %v2213
        %2473 = vmatpush1.msra.mxu0 %v2212
        %2474 = vmatprep.subr.mxu0 0.0
        %2475 = vmatpush1.msra.mxu0 0.0
        %2476 = vmatprep.subr.mxu0 0.0
        %2477 = vmatpush1.msra.mxu0 0.0
        %2478 = vmatprep.subr.mxu0 0.0
        %2479 = vmatpush1.msra.mxu0 0.0
        %2480 = vmatprep.subr.mxu0 0.0
        %2481 = vmatpush1.msra.mxu0 0.0
        %2482 = vmatprep.subr.mxu0 0.0
        %2483 = vmatpush1.msra.mxu0 0.0
        %2484 = vmatprep.subr.mxu0 0.0
        %2485 = vmatpush1.msra.mxu0 0.0
        %2486 = vmatprep.subr.mxu0 0.0
        %2487 = vmatpush1.msra.mxu0 0.0
        %2488 = vmatprep.subr.mxu0 0.0
        %2489 = vmatpush1.msra.mxu0 0.0
        %2490 = vmatprep.subr.mxu0 0.0
        %2491 = vmatpush1.msra.mxu0 0.0
        %2492 = vmatprep.subr.mxu0 0.0
        %2493 = vmatpush1.msra.mxu0 0.0
        %2494 = vmatprep.subr.mxu0 0.0
        %2495 = vmatpush1.msra.mxu0 0.0
        %2496 = vmatprep.subr.mxu0 0.0
        %2497 = vmatpush1.msra.mxu0 0.0
        %2498 = vmatprep.subr.mxu0 0.0
        %2499 = vmatpush1.msra.mxu0 0.0
        %2500 = vmatprep.subr.mxu0 0.0
        %2501 = vmatpush1.msra.mxu0 0.0
        %2502 = vmatprep.subr.mxu0 0.0
        %2503 = vmatpush1.msra.mxu0 0.0
        %2504 = vmatprep.subr.mxu0 0.0
        %2505 = vmatpush1.msra.mxu0 0.0
        %2506 = vmatprep.subr.mxu0 0.0
        %2507 = vmatpush1.msra.mxu0 0.0
        %2508 = vmatprep.subr.mxu0 0.0
        %2509 = vmatpush1.msra.mxu0 0.0
        %2510 = vmatprep.subr.mxu0 0.0
        %2511 = vmatpush1.msra.mxu0 0.0
        %2512 = vmatprep.subr.mxu0 0.0
        %2513 = vmatpush1.msra.mxu0 0.0
        %2514 = vmatprep.subr.mxu0 0.0
        %2515 = vmatpush1.msra.mxu0 0.0
        %2516 = vmatprep.subr.mxu0 0.0
        %2517 = vmatpush1.msra.mxu0 0.0
        %2518 = vmatprep.subr.mxu0 0.0
        %2519 = vmatpush1.msra.mxu0 0.0
        %2520 = vmatprep.subr.mxu0 0.0
        %2521 = vmatpush1.msra.mxu0 0.0
        %2522 = vmatprep.subr.mxu0 0.0
        %2523 = vmatpush1.msra.mxu0 0.0
        %2524 = vmatprep.subr.mxu0 0.0
        %2525 = vmatpush1.msra.mxu0 0.0
        %2526 = vmatprep.subr.mxu0 0.0
        %2527 = vmatpush1.msra.mxu0 0.0
        %2528 = vmatprep.subr.mxu0 0.0
        %2529 = vmatpush1.msra.mxu0 0.0
        %2530 = vmatprep.mubr.f32.mxu0 0.0
        %2531 = vmatmul.mubr.f32.gmra.mrb[0].mxu0 %v2230
        %v2532 = vpop.f32.mrb[0].mxu0
        %v2533 = vadd.f32 %v2221, %v2532
        %v2534 = vpop.f32.mrb[0].mxu0
        %v2535 = vadd.f32 %v2221, %v2534
        %2536 = vmatprep.mubr.f32.mxu0 0.0
        %2537 = vmatmul.mubr.f32.gmra.mrb[0].mxu0 %v2233
        %v2538 = vpop.f32.mrb[0].mxu0
        %v2539 = vadd.f32 %v2226, %v2538
        %v2540 = vpop.f32.mrb[0].mxu0
        %v2541 = vadd.f32 %v2226, %v2540
        %2542 = vdwg.mxu0
        %v2543 = vmax.f32 %v2302, 0.0
        %v2544 = vmax.f32 %v2304, 0.0
        %v2545 = vmax.f32 %v2379, 0.0
        %v2546 = vmax.f32 %v2381, 0.0
        %v2547 = vmax.f32 %v2456, 0.0
        %v2548 = vmax.f32 %v2458, 0.0
        %v2549 = vmax.f32 %v2533, 0.0
        %v2550 = vmax.f32 %v2535, 0.0
        %v2551 = vmax.f32 %v2308, 0.0
        %v2552 = vmax.f32 %v2310, 0.0
        %v2553 = vmax.f32 %v2385, 0.0
        %v2554 = vmax.f32 %v2387, 0.0
        %v2555 = vmax.f32 %v2462, 0.0
        %v2556 = vmax.f32 %v2464, 0.0
        %v2557 = vmax.f32 %v2539, 0.0
        %v2558 = vmax.f32 %v2541, 0.0
        %v2559 = vld [vmem:[%s7] sm:$0xff]
        %v2560 = vld [vmem:[%s8] sm:$0xff]
        %2562 = vset.pattern.permute.xlu0 0
        %2563 = vperm.xlu0 %2562, %v2560
        %v2564 = vpop.permute.xlu0 %2563
        %vm2566 = vcmask 130048
        %v2568 = vsel %vm2566, %v2559, 0
        %2570 = vmatprep.subr.mxu0 %v2544
        %2571 = vmatpush1.msra.mxu0 %v2543
        %2572 = vmatprep.subr.mxu0 %v2552
        %2573 = vmatpush1.msra.mxu0 %v2551
        %2574 = vmatprep.subr.mxu0 0.0
        %2575 = vmatpush1.msra.mxu0 0.0
        %2576 = vmatprep.subr.mxu0 0.0
        %2577 = vmatpush1.msra.mxu0 0.0
        %2578 = vmatprep.subr.mxu0 0.0
        %2579 = vmatpush1.msra.mxu0 0.0
        %2580 = vmatprep.subr.mxu0 0.0
        %2581 = vmatpush1.msra.mxu0 0.0
        %2582 = vmatprep.subr.mxu0 0.0
        %2583 = vmatpush1.msra.mxu0 0.0
        %2584 = vmatprep.subr.mxu0 0.0
        %2585 = vmatpush1.msra.mxu0 0.0
        %2586 = vmatprep.subr.mxu0 0.0
        %2587 = vmatpush1.msra.mxu0 0.0
        %2588 = vmatprep.subr.mxu0 0.0
        %2589 = vmatpush1.msra.mxu0 0.0
        %2590 = vmatprep.subr.mxu0 0.0
        %2591 = vmatpush1.msra.mxu0 0.0
        %2592 = vmatprep.subr.mxu0 0.0
        %2593 = vmatpush1.msra.mxu0 0.0
        %2594 = vmatprep.subr.mxu0 0.0
        %2595 = vmatpush1.msra.mxu0 0.0
        %2596 = vmatprep.subr.mxu0 0.0
        %2597 = vmatpush1.msra.mxu0 0.0
        %2598 = vmatprep.subr.mxu0 0.0
        %2599 = vmatpush1.msra.mxu0 0.0
        %2600 = vmatprep.subr.mxu0 0.0
        %2601 = vmatpush1.msra.mxu0 0.0
        %2602 = vmatprep.subr.mxu0 0.0
        %2603 = vmatpush1.msra.mxu0 0.0
        %2604 = vmatprep.subr.mxu0 0.0
        %2605 = vmatpush1.msra.mxu0 0.0
        %2606 = vmatprep.subr.mxu0 0.0
        %2607 = vmatpush1.msra.mxu0 0.0
        %2608 = vmatprep.subr.mxu0 0.0
        %2609 = vmatpush1.msra.mxu0 0.0
        %2610 = vmatprep.subr.mxu0 0.0
        %2611 = vmatpush1.msra.mxu0 0.0
        %2612 = vmatprep.subr.mxu0 0.0
        %2613 = vmatpush1.msra.mxu0 0.0
        %2614 = vmatprep.subr.mxu0 0.0
        %2615 = vmatpush1.msra.mxu0 0.0
        %2616 = vmatprep.subr.mxu0 0.0
        %2617 = vmatpush1.msra.mxu0 0.0
        %2618 = vmatprep.subr.mxu0 0.0
        %2619 = vmatpush1.msra.mxu0 0.0
        %2620 = vmatprep.subr.mxu0 0.0
        %2621 = vmatpush1.msra.mxu0 0.0
        %2622 = vmatprep.subr.mxu0 0.0
        %2623 = vmatpush1.msra.mxu0 0.0
        %2624 = vmatprep.subr.mxu0 0.0
        %2625 = vmatpush1.msra.mxu0 0.0
        %2626 = vmatprep.subr.mxu0 0.0
        %2627 = vmatpush1.msra.mxu0 0.0
        %2628 = vmatprep.subr.mxu0 0.0
        %2629 = vmatpush1.msra.mxu0 0.0
        %2630 = vmatprep.subr.mxu0 0.0
        %2631 = vmatpush1.msra.mxu0 0.0
        %2632 = vmatprep.subr.mxu0 0.0
        %2633 = vmatpush1.msra.mxu0 0.0
        %2634 = vmatprep.mubr.f32.mxu0 0.0
        %2635 = vmatmul.mubr.f32.gmra.mrb[0].mxu0 %v2568
        %v2636 = vpop.f32.mrb[0].mxu0
        %v2637 = vadd.f32 %v2564, %v2636
        %v2638 = vpop.f32.mrb[0].mxu0
        %v2639 = vadd.f32 %v2564, %v2638
        %2640 = vdwg.mxu0
        %2641 = vmatprep.subr.mxu0 %v2546
        %2642 = vmatpush1.msra.mxu0 %v2545
        %2643 = vmatprep.subr.mxu0 %v2554
        %2644 = vmatpush1.msra.mxu0 %v2553
        %2645 = vmatprep.subr.mxu0 0.0
        %2646 = vmatpush1.msra.mxu0 0.0
        %2647 = vmatprep.subr.mxu0 0.0
        %2648 = vmatpush1.msra.mxu0 0.0
        %2649 = vmatprep.subr.mxu0 0.0
        %2650 = vmatpush1.msra.mxu0 0.0
        %2651 = vmatprep.subr.mxu0 0.0
        %2652 = vmatpush1.msra.mxu0 0.0
        %2653 = vmatprep.subr.mxu0 0.0
        %2654 = vmatpush1.msra.mxu0 0.0
        %2655 = vmatprep.subr.mxu0 0.0
        %2656 = vmatpush1.msra.mxu0 0.0
        %2657 = vmatprep.subr.mxu0 0.0
        %2658 = vmatpush1.msra.mxu0 0.0
        %2659 = vmatprep.subr.mxu0 0.0
        %2660 = vmatpush1.msra.mxu0 0.0
        %2661 = vmatprep.subr.mxu0 0.0
        %2662 = vmatpush1.msra.mxu0 0.0
        %2663 = vmatprep.subr.mxu0 0.0
        %2664 = vmatpush1.msra.mxu0 0.0
        %2665 = vmatprep.subr.mxu0 0.0
        %2666 = vmatpush1.msra.mxu0 0.0
        %2667 = vmatprep.subr.mxu0 0.0
        %2668 = vmatpush1.msra.mxu0 0.0
        %2669 = vmatprep.subr.mxu0 0.0
        %2670 = vmatpush1.msra.mxu0 0.0
        %2671 = vmatprep.subr.mxu0 0.0
        %2672 = vmatpush1.msra.mxu0 0.0
        %2673 = vmatprep.subr.mxu0 0.0
        %2674 = vmatpush1.msra.mxu0 0.0
        %2675 = vmatprep.subr.mxu0 0.0
        %2676 = vmatpush1.msra.mxu0 0.0
        %2677 = vmatprep.subr.mxu0 0.0
        %2678 = vmatpush1.msra.mxu0 0.0
        %2679 = vmatprep.subr.mxu0 0.0
        %2680 = vmatpush1.msra.mxu0 0.0
        %2681 = vmatprep.subr.mxu0 0.0
        %2682 = vmatpush1.msra.mxu0 0.0
        %2683 = vmatprep.subr.mxu0 0.0
        %2684 = vmatpush1.msra.mxu0 0.0
        %2685 = vmatprep.subr.mxu0 0.0
        %2686 = vmatpush1.msra.mxu0 0.0
        %2687 = vmatprep.subr.mxu0 0.0
        %2688 = vmatpush1.msra.mxu0 0.0
        %2689 = vmatprep.subr.mxu0 0.0
        %2690 = vmatpush1.msra.mxu0 0.0
        %2691 = vmatprep.subr.mxu0 0.0
        %2692 = vmatpush1.msra.mxu0 0.0
        %2693 = vmatprep.subr.mxu0 0.0
        %2694 = vmatpush1.msra.mxu0 0.0
        %2695 = vmatprep.subr.mxu0 0.0
        %2696 = vmatpush1.msra.mxu0 0.0
        %2697 = vmatprep.subr.mxu0 0.0
        %2698 = vmatpush1.msra.mxu0 0.0
        %2699 = vmatprep.subr.mxu0 0.0
        %2700 = vmatpush1.msra.mxu0 0.0
        %2701 = vmatprep.subr.mxu0 0.0
        %2702 = vmatpush1.msra.mxu0 0.0
        %2703 = vmatprep.subr.mxu0 0.0
        %2704 = vmatpush1.msra.mxu0 0.0
        %2705 = vmatprep.mubr.f32.mxu0 0.0
        %2706 = vmatmul.mubr.f32.gmra.mrb[0].mxu0 %v2568
        %v2707 = vpop.f32.mrb[0].mxu0
        %v2708 = vadd.f32 %v2564, %v2707
        %v2709 = vpop.f32.mrb[0].mxu0
        %v2710 = vadd.f32 %v2564, %v2709
        %2711 = vdwg.mxu0
        %2712 = vmatprep.subr.mxu0 %v2548
        %2713 = vmatpush1.msra.mxu0 %v2547
        %2714 = vmatprep.subr.mxu0 %v2556
        %2715 = vmatpush1.msra.mxu0 %v2555
        %2716 = vmatprep.subr.mxu0 0.0
        %2717 = vmatpush1.msra.mxu0 0.0
        %2718 = vmatprep.subr.mxu0 0.0
        %2719 = vmatpush1.msra.mxu0 0.0
        %2720 = vmatprep.subr.mxu0 0.0
        %2721 = vmatpush1.msra.mxu0 0.0
        %2722 = vmatprep.subr.mxu0 0.0
        %2723 = vmatpush1.msra.mxu0 0.0
        %2724 = vmatprep.subr.mxu0 0.0
        %2725 = vmatpush1.msra.mxu0 0.0
        %2726 = vmatprep.subr.mxu0 0.0
        %2727 = vmatpush1.msra.mxu0 0.0
        %2728 = vmatprep.subr.mxu0 0.0
        %2729 = vmatpush1.msra.mxu0 0.0
        %2730 = vmatprep.subr.mxu0 0.0
        %2731 = vmatpush1.msra.mxu0 0.0
        %2732 = vmatprep.subr.mxu0 0.0
        %2733 = vmatpush1.msra.mxu0 0.0
        %2734 = vmatprep.subr.mxu0 0.0
        %2735 = vmatpush1.msra.mxu0 0.0
        %2736 = vmatprep.subr.mxu0 0.0
        %2737 = vmatpush1.msra.mxu0 0.0
        %2738 = vmatprep.subr.mxu0 0.0
        %2739 = vmatpush1.msra.mxu0 0.0
        %2740 = vmatprep.subr.mxu0 0.0
        %2741 = vmatpush1.msra.mxu0 0.0
        %2742 = vmatprep.subr.mxu0 0.0
        %2743 = vmatpush1.msra.mxu0 0.0
        %2744 = vmatprep.subr.mxu0 0.0
        %2745 = vmatpush1.msra.mxu0 0.0
        %2746 = vmatprep.subr.mxu0 0.0
        %2747 = vmatpush1.msra.mxu0 0.0
        %2748 = vmatprep.subr.mxu0 0.0
        %2749 = vmatpush1.msra.mxu0 0.0
        %2750 = vmatprep.subr.mxu0 0.0
        %2751 = vmatpush1.msra.mxu0 0.0
        %2752 = vmatprep.subr.mxu0 0.0
        %2753 = vmatpush1.msra.mxu0 0.0
        %2754 = vmatprep.subr.mxu0 0.0
        %2755 = vmatpush1.msra.mxu0 0.0
        %2756 = vmatprep.subr.mxu0 0.0
        %2757 = vmatpush1.msra.mxu0 0.0
        %2758 = vmatprep.subr.mxu0 0.0
        %2759 = vmatpush1.msra.mxu0 0.0
        %2760 = vmatprep.subr.mxu0 0.0
        %2761 = vmatpush1.msra.mxu0 0.0
        %2762 = vmatprep.subr.mxu0 0.0
        %2763 = vmatpush1.msra.mxu0 0.0
        %2764 = vmatprep.subr.mxu0 0.0
        %2765 = vmatpush1.msra.mxu0 0.0
        %2766 = vmatprep.subr.mxu0 0.0
        %2767 = vmatpush1.msra.mxu0 0.0
        %2768 = vmatprep.subr.mxu0 0.0
        %2769 = vmatpush1.msra.mxu0 0.0
        %2770 = vmatprep.subr.mxu0 0.0
        %2771 = vmatpush1.msra.mxu0 0.0
        %2772 = vmatprep.subr.mxu0 0.0
        %2773 = vmatpush1.msra.mxu0 0.0
        %2774 = vmatprep.subr.mxu0 0.0
        %2775 = vmatpush1.msra.mxu0 0.0
        %2776 = vmatprep.mubr.f32.mxu0 0.0
        %2777 = vmatmul.mubr.f32.gmra.mrb[0].mxu0 %v2568
        %v2778 = vpop.f32.mrb[0].mxu0
        %v2779 = vadd.f32 %v2564, %v2778
        %v2780 = vpop.f32.mrb[0].mxu0
        %v2781 = vadd.f32 %v2564, %v2780
        %2782 = vdwg.mxu0
        %2783 = vmatprep.subr.mxu0 %v2550
        %2784 = vmatpush1.msra.mxu0 %v2549
        %2785 = vmatprep.subr.mxu0 %v2558
        %2786 = vmatpush1.msra.mxu0 %v2557
        %2787 = vmatprep.subr.mxu0 0.0
        %2788 = vmatpush1.msra.mxu0 0.0
        %2789 = vmatprep.subr.mxu0 0.0
        %2790 = vmatpush1.msra.mxu0 0.0
        %2791 = vmatprep.subr.mxu0 0.0
        %2792 = vmatpush1.msra.mxu0 0.0
        %2793 = vmatprep.subr.mxu0 0.0
        %2794 = vmatpush1.msra.mxu0 0.0
        %2795 = vmatprep.subr.mxu0 0.0
        %2796 = vmatpush1.msra.mxu0 0.0
        %2797 = vmatprep.subr.mxu0 0.0
        %2798 = vmatpush1.msra.mxu0 0.0
        %2799 = vmatprep.subr.mxu0 0.0
        %2800 = vmatpush1.msra.mxu0 0.0
        %2801 = vmatprep.subr.mxu0 0.0
        %2802 = vmatpush1.msra.mxu0 0.0
        %2803 = vmatprep.subr.mxu0 0.0
        %2804 = vmatpush1.msra.mxu0 0.0
        %2805 = vmatprep.subr.mxu0 0.0
        %2806 = vmatpush1.msra.mxu0 0.0
        %2807 = vmatprep.subr.mxu0 0.0
        %2808 = vmatpush1.msra.mxu0 0.0
        %2809 = vmatprep.subr.mxu0 0.0
        %2810 = vmatpush1.msra.mxu0 0.0
        %2811 = vmatprep.subr.mxu0 0.0
        %2812 = vmatpush1.msra.mxu0 0.0
        %2813 = vmatprep.subr.mxu0 0.0
        %2814 = vmatpush1.msra.mxu0 0.0
        %2815 = vmatprep.subr.mxu0 0.0
        %2816 = vmatpush1.msra.mxu0 0.0
        %2817 = vmatprep.subr.mxu0 0.0
        %2818 = vmatpush1.msra.mxu0 0.0
        %2819 = vmatprep.subr.mxu0 0.0
        %2820 = vmatpush1.msra.mxu0 0.0
        %2821 = vmatprep.subr.mxu0 0.0
        %2822 = vmatpush1.msra.mxu0 0.0
        %2823 = vmatprep.subr.mxu0 0.0
        %2824 = vmatpush1.msra.mxu0 0.0
        %2825 = vmatprep.subr.mxu0 0.0
        %2826 = vmatpush1.msra.mxu0 0.0
        %2827 = vmatprep.subr.mxu0 0.0
        %2828 = vmatpush1.msra.mxu0 0.0
        %2829 = vmatprep.subr.mxu0 0.0
        %2830 = vmatpush1.msra.mxu0 0.0
        %2831 = vmatprep.subr.mxu0 0.0
        %2832 = vmatpush1.msra.mxu0 0.0
        %2833 = vmatprep.subr.mxu0 0.0
        %2834 = vmatpush1.msra.mxu0 0.0
        %2835 = vmatprep.subr.mxu0 0.0
        %2836 = vmatpush1.msra.mxu0 0.0
        %2837 = vmatprep.subr.mxu0 0.0
        %2838 = vmatpush1.msra.mxu0 0.0
        %2839 = vmatprep.subr.mxu0 0.0
        %2840 = vmatpush1.msra.mxu0 0.0
        %2841 = vmatprep.subr.mxu0 0.0
        %2842 = vmatpush1.msra.mxu0 0.0
        %2843 = vmatprep.subr.mxu0 0.0
        %2844 = vmatpush1.msra.mxu0 0.0
        %2845 = vmatprep.subr.mxu0 0.0
        %2846 = vmatpush1.msra.mxu0 0.0
        %2847 = vmatprep.mubr.f32.mxu0 0.0
        %2848 = vmatmul.mubr.f32.gmra.mrb[0].mxu0 %v2568
        %v2849 = vpop.f32.mrb[0].mxu0
        %v2850 = vadd.f32 %v2564, %v2849
        %v2851 = vpop.f32.mrb[0].mxu0
        %v2852 = vadd.f32 %v2564, %v2851
        %2853 = vdwg.mxu0
        %2854 = vst [vmem:[%s342] sm:$0xff] %v2637
        %2855 = vst [vmem:[%s342 + $0x8] sm:$0xff] %v2639
        %2856 = vst [vmem:[%s342 + $0x10] sm:$0xff] %v2708
        %2857 = vst [vmem:[%s342 + $0x18] sm:$0xff] %v2710
        %2858 = vst [vmem:[%s342 + $0x20] sm:$0xff] %v2779
        %2859 = vst [vmem:[%s342 + $0x28] sm:$0xff] %v2781
        %2860 = vst [vmem:[%s342 + $0x30] sm:$0xff] %v2850
        %2861 = vst [vmem:[%s342 + $0x38] sm:$0xff] %v2852
        %s2862 = sand.u32 %s230, 1
        %s2863 = scalar_lea.sflag [#allocation3], %s2862
        %s2864 = sand.u32 %s230, 1
        %s2865 = smul.addr %s2864, 64
        %s2866 = scalar_lea.vmem [#allocation2], %s2865
        // Predicated region
        $region57: #{state_predictor_forward.1} parent=55 // pred_check
          %p2867 = pneg %p240
        $region58: #{state_predictor_forward.1} parent=55 // pred_check_branch
          %2869 = sbr.rel (%p2867) target = $region60
        $region59: #{state_predictor_forward.1} parent=55 // pred_region
          %s2870 = smul.u32 8, %s23
          %s2872 = ssub.s32 1024, 1024
          %2873 = vsyncadd %s2863, %s2872
          %s2874 = smul.addr %s2870, 128
          %s2875 = scalar_lea.hbm %s9, %s2874
          %s2877 = sshll.u32 %s2866, 4
          %s2878 = int_to_ptr.vmem [resolvable:$true] %s2877
          %2880 = dma.vmem_to_hbm [thread:$0]  %s2878, 1024, %s2875, %s2863
        $region60: #{state_predictor_forward.1} parent=55 // pred_fallthru
          _
      $region56: #{state_predictor_forward.1} parent=5 // pred_fallthru
        _
      %p2881 = scmp.le.s32.totalorder 2, %s18
      // Predicated region
      $region61: #{state_predictor_forward.1} parent=5 // pred_check
        %p2882 = pneg %p2881
      $region62: #{state_predictor_forward.1} parent=5 // pred_check_branch
        %2884 = sbr.rel (%p2882) target = $region64
      $region63: #{state_predictor_forward.1} parent=5 // pred_region
        %s2885 = ssub.s32 %s18, 2
        // Predicated region
        $region65: #{state_predictor_forward.1} parent=63 // pred_check
          %p2886 = pneg %p246
        $region66: #{state_predictor_forward.1} parent=63 // pred_check_branch
          %2888 = sbr.rel (%p2886) target = $region68
        $region67: #{state_predictor_forward.1} parent=63 // pred_region
          %s2889 = sand.u32 %s231, 1
          %s2890 = scalar_lea.sflag [#allocation3], %s2889
          %s2891 = sand.u32 %s231, 1
          %s2892 = smul.addr %s2891, 64
          %s2893 = scalar_lea.vmem [#allocation2], %s2892
          %2894 = dma.done %s2890, 1024
        $region68: #{state_predictor_forward.1} parent=63 // pred_fallthru
          _
      $region64: #{state_predictor_forward.1} parent=5 // pred_fallthru
        _
    $region6: #{state_predictor_forward.1} parent=1 // loop_footer
      %s22 = sadd.s32 1, %s18
    $region7: #{state_predictor_forward.1} parent=1 // loop_footer_branch
      %17 = sbr.rel target = $region3
    $region8: #{state_predictor_forward.1} parent=1 // loop_exit
      _
    %2895 = vsyncpa [#allocation3], 1
    %s2896 = scalar_lea.sflag [#allocation3], 1
    %2897 = vsyncpa %s2896, 1

</llo_original>
